<compile_context>
chip_gen: v7x
topology: tpu7x:2x2x1
jax: 0.10.0
libtpu: 0.0.40
codegen_flags: <defaults>
</compile_context>

<pallas_src>
import jax
import jax.numpy as jnp
from jax.experimental import pallas as pl
from jax.experimental.pallas import tpu as pltpu

_BN_EPS = 1e-5
_SUBLANE = 8


def _round_up(x, m):
    return (x + m - 1) // m * m


def _vmem_budget():
    """(vmem_limit_bytes, per-tile byte budget), generation-aware."""
    cap = 64 * 1024 * 1024                        # conservative default (v7x)
    try:
        cap = int(pltpu.get_tpu_info().vmem_capacity_bytes)
    except Exception:
        pass
    if cap >= 128 * 1024 * 1024:                  # v5e / v6e: 128 MiB physical
        return 96 * 1024 * 1024, 40 * 1024 * 1024
    return 48 * 1024 * 1024, 20 * 1024 * 1024     # v7x: 64 MiB per TensorCore


def _choose_tm(m, k, cout, tile_budget):
    """Largest row tile (multiple of 8) that fits the budget while leaving at
    least two grid steps so both v7x TensorCores get work."""
    m8 = _round_up(max(m, _SUBLANE), _SUBLANE)
    cap = max(_SUBLANE, (m8 // 2) // _SUBLANE * _SUBLANE)
    fixed = 2 * (k * cout * 2)                    # double-buffered bf16 weights
    per_row = 2 * (2 * k + 6 * cout)              # double-buffered patch/out rows
    for tm in (16384, 8192, 4096, 2048, 1024, 512, 256, 128, 64, 32, 16, 8):
        if tm <= cap and fixed + tm * per_row <= tile_budget:
            return tm
    return _SUBLANE


# ----------------------------- Pallas kernels ------------------------------ #
def _conv_stats_kernel(p_ref, w_ref, y_ref, stats_ref):
    # p_ref: (TM, K) bf16 patches; w_ref: (K, C) bf16 weights (K, C unpadded).
    acc = jnp.dot(p_ref[...], w_ref[...], preferred_element_type=jnp.float32)
    # Per-tile partial BN statistics from the fp32 accumulator (before the
    # bf16 down-cast); the cross-tile reduce happens outside so BatchNorm
    # statistics stay global even when M is tiled.
    stats_ref[...] = jnp.zeros_like(stats_ref)
    stats_ref[0:1, :] = jnp.sum(acc, axis=0, keepdims=True)
    stats_ref[1:2, :] = jnp.sum(acc * acc, axis=0, keepdims=True)
    # bf16 conv-out intermediate: halves the dominant HBM stream.
    y_ref[...] = acc.astype(y_ref.dtype)


def _bn_relu_kernel(y_ref, ss_ref, o_ref):
    # ss_ref: (2, C) fp32; row 0 = scale = gamma*rsqrt(var+eps),
    #                      row 1 = shift = beta - mean*scale.
    y = y_ref[...].astype(jnp.float32)
    o_ref[...] = jnp.maximum(y * ss_ref[0:1, :] + ss_ref[1:2, :], 0.0
                             ).astype(o_ref.dtype)


# ------------------------------ JAX glue ----------------------------------- #
def _conv_bn_relu(x_nhwc, w_oihw, gamma, beta, *, stride, out_dtype, tile_m=None):
    cout, cin, kh, kw = w_oihw.shape
    n, h, w = x_nhwc.shape[0], x_nhwc.shape[1], x_nhwc.shape[2]
    ho = (h + 2 - kh) // stride + 1
    wo = (w + 2 - kw) // stride + 1

    # Patch extraction (XLA-fused), bf16.  Feature ordering is (cin, kh, kw).
    patches = jax.lax.conv_general_dilated_patches(
        x_nhwc.astype(jnp.bfloat16),
        filter_shape=(kh, kw),
        window_strides=(stride, stride),
        padding=((1, 1), (1, 1)),
        dimension_numbers=("NHWC", "HWIO", "NHWC"),
    )                                              # (N, Ho, Wo, Cin*kh*kw)
    m = n * ho * wo
    k = cin * kh * kw
    patches = patches.reshape(m, k)

    vmem_limit, tile_budget = _vmem_budget()
    tm = tile_m if tile_m is not None else _choose_tm(m, k, cout, tile_budget)
    m_pad = _round_up(max(m, tm), tm)
    nt = m_pad // tm
    if m_pad != m:
        patches = jnp.pad(patches, ((0, m_pad - m), (0, 0)))

    # PyTorch weight (Cout, Cin, KH, KW) -> (Cin, KH, KW, Cout) -> (K, Cout)
    # to match the (cin, kh, kw) K ordering of conv_general_dilated_patches.
    w2d = jnp.transpose(w_oihw, (1, 2, 3, 0)).reshape(k, cout).astype(jnp.bfloat16)

    # ---- Pass A: tiled MXU matmul + per-tile partial BN statistics ---------
    conv_out, part_stats = pl.pallas_call(
        _conv_stats_kernel,
        out_shape=(jax.ShapeDtypeStruct((m_pad, cout), jnp.bfloat16),
                   jax.ShapeDtypeStruct((nt * 8, cout), jnp.float32)),
        grid=(nt,),
        in_specs=[pl.BlockSpec((tm, k), lambda i: (i, 0)),
                  pl.BlockSpec((k, cout), lambda i: (0, 0))],
        out_specs=(pl.BlockSpec((tm, cout), lambda i: (i, 0)),
                   pl.BlockSpec((8, cout), lambda i: (i, 0))),
        compiler_params=pltpu.CompilerParams(
            dimension_semantics=("parallel",),
            vmem_limit_bytes=vmem_limit),
        cost_estimate=pl.CostEstimate(
            flops=2 * m_pad * k * cout,
            transcendentals=0,
            bytes_accessed=(m_pad * k * 2 + k * cout * 2
                            + m_pad * cout * 2 + nt * 8 * cout * 4)),
    )(patches, w2d)

    # ---- Global BN statistics (training-mode batch stats, biased variance) -
    # Padded rows of the patch matrix are exactly zero, so dividing the
    # accumulated sums by the real M gives the exact batch statistics.
    part_stats = part_stats.reshape(nt, 8, cout)
    tot = jnp.sum(part_stats[:, 0, :], axis=0)
    tot_sq = jnp.sum(part_stats[:, 1, :], axis=0)
    mean = tot / m
    var = jnp.maximum(tot_sq / m - mean * mean, 0.0)
    inv_std = jax.lax.rsqrt(var + _BN_EPS)
    scale = gamma.astype(jnp.float32) * inv_std
    shift = beta.astype(jnp.float32) - mean * scale
    scale_shift = jnp.stack([scale, shift], axis=0)        # (2, Cout) fp32

    # ---- Pass B: normalize + ReLU ------------------------------------------
    out_itemsize = jnp.dtype(out_dtype).itemsize
    out = pl.pallas_call(
        _bn_relu_kernel,
        out_shape=jax.ShapeDtypeStruct((m_pad, cout), out_dtype),
        grid=(nt,),
        in_specs=[pl.BlockSpec((tm, cout), lambda i: (i, 0)),
                  pl.BlockSpec((2, cout), lambda i: (0, 0))],
        out_specs=pl.BlockSpec((tm, cout), lambda i: (i, 0)),
        compiler_params=pltpu.CompilerParams(
            dimension_semantics=("parallel",),
            vmem_limit_bytes=vmem_limit),
        cost_estimate=pl.CostEstimate(
            flops=3 * m_pad * cout,
            transcendentals=0,
            bytes_accessed=m_pad * cout * (2 + out_itemsize) + 2 * cout * 4),
    )(conv_out, scale_shift)

    # TODO(synk): BatchNorm running_mean/running_var buffer updates are a
    # training-time side effect that does not change the forward output and
    # is not reproduced here.
    return out[:m].reshape(n, ho, wo, cout)


def _forward(x_nchw, params, *, tile_m=None):
    x = jnp.transpose(x_nchw, (0, 2, 3, 1))                # NCHW -> NHWC
    x = _conv_bn_relu(x, params["w1"], params["g1"], params["b1"], stride=2,
                      out_dtype=jnp.bfloat16, tile_m=tile_m)
    x = _conv_bn_relu(x, params["w2"], params["g2"], params["b2"], stride=1,
                      out_dtype=jnp.bfloat16, tile_m=tile_m)
    x = _conv_bn_relu(x, params["w3"], params["g3"], params["b3"], stride=2,
                      out_dtype=jnp.float32, tile_m=tile_m)
    return jnp.transpose(x, (0, 3, 1, 2))                  # NHWC -> NCHW


patch_embed_stage1 = jax.jit(_forward, static_argnames=("tile_m",))


# ------------------------- deterministic init ------------------------------ #
def init_params(key, in_chans, mid_embed_dim, embed_dim):
    k1, k2, k3 = jax.random.split(key, 3)

    def bn_affine(c):
        i = jnp.arange(c, dtype=jnp.float32)
        return 1.0 + 0.01 * i, 0.02 * jnp.sin(i)

    g1, b1 = bn_affine(mid_embed_dim)
    g2, b2 = bn_affine(mid_embed_dim)
    g3, b3 = bn_affine(embed_dim)
    return {
        "w1": 0.1 * jax.random.normal(k1, (mid_embed_dim, in_chans, 3, 3), jnp.float32),
        "w2": 0.1 * jax.random.normal(k2, (mid_embed_dim, mid_embed_dim, 3, 3), jnp.float32),
        "w3": 0.1 * jax.random.normal(k3, (embed_dim, mid_embed_dim, 3, 3), jnp.float32),
        "g1": g1, "b1": b1, "g2": g2, "b2": b2, "g3": g3, "b3": b3,
    }


# ------------------------- pure-JAX reference ------------------------------ #
def _ref_conv_bn_relu(x_nhwc, w_oihw, gamma, beta, *, stride, out_dtype):
    # Mirrors the kernel's precision choices: bf16 conv inputs, fp32 accumulate,
    # fp32 batch statistics, bf16 conv-out intermediate, bf16 inter-layer acts.
    w_hwio = jnp.transpose(w_oihw, (2, 3, 1, 0)).astype(jnp.bfloat16)
    y = jax.lax.conv_general_dilated(
        x_nhwc.astype(jnp.bfloat16), w_hwio,
        window_strides=(stride, stride), padding=((1, 1), (1, 1)),
        dimension_numbers=("NHWC", "HWIO", "NHWC"),
        preferred_element_type=jnp.float32)
    mean = jnp.mean(y, axis=(0, 1, 2), keepdims=True)
    var = jnp.mean((y - mean) ** 2, axis=(0, 1, 2), keepdims=True)
    scale = gamma * jax.lax.rsqrt(var + _BN_EPS)
    shift = beta - mean * scale
    y_q = y.astype(jnp.bfloat16).astype(jnp.float32)       # bf16 conv-out intermediate
    return jnp.maximum(y_q * scale + shift, 0.0).astype(out_dtype)


def patch_embed_stage1_ref(x_nchw, params):
    x = jnp.transpose(x_nchw, (0, 2, 3, 1))
    x = _ref_conv_bn_relu(x, params["w1"], params["g1"], params["b1"], stride=2,
                          out_dtype=jnp.bfloat16)
    x = _ref_conv_bn_relu(x, params["w2"], params["g2"], params["b2"], stride=1,
                          out_dtype=jnp.bfloat16)
    x = _ref_conv_bn_relu(x, params["w3"], params["g3"], params["b3"], stride=2,
                          out_dtype=jnp.float32)
    return jnp.transpose(x, (0, 3, 1, 2))


# --------------------------------- main ------------------------------------ #
if __name__ == "__main__":
    key = jax.random.PRNGKey(0)
    k_x, k_p = jax.random.split(key)

    # Small shapes consistent with the module: in_chans=4, mid=32, embed=64.
    N, C, H, W = 2, 4, 16, 16
    MID, EMB = 32, 64

    x = jax.random.normal(k_x, (N, C, H, W), jnp.float32)
    params = init_params(k_p, C, MID, EMB)

    out = jax.block_until_ready(patch_embed_stage1(x, params))

    # Shape check: two stride-2 convs -> H/4, W/4, embed_dim channels.
    assert out.shape == (N, EMB, H // 4, W // 4), out.shape

    ref = jax.block_until_ready(patch_embed_stage1_ref(x, params))
    max_err = float(jnp.max(jnp.abs(out - ref)))
    mean_err = float(jnp.mean(jnp.abs(out - ref)))
    # bf16 intermediates: isolated 1-ULP rounding flips scaled by the BN gain
    # can reach a few e-2 max-abs; real indexing/stats bugs produce O(0.1-1)
    # max error and O(0.1) mean error, so both checks stay discriminative.
    assert max_err < 8e-2, (max_err, mean_err)
    assert mean_err < 5e-3, (max_err, mean_err)

    # Exercise the multi-tile path (partial BN stats accumulated across grid
    # steps) by forcing a small row tile; only the stats reduction order (and
    # hence occasional bf16 ULPs downstream) may differ.
    out_tiled = jax.block_until_ready(patch_embed_stage1(x, params, tile_m=32))
    err_t = float(jnp.max(jnp.abs(out_tiled - out)))
    assert err_t < 8e-2, err_t

    print("KERNEL_OK")
</pallas_src>

<mosaic_0001>
module attributes {stable_mosaic.version = 11 : i64} {
  func.func @_conv_stats_kernel(%arg0: i32, %arg1: memref<64x36xbf16, #tpu.memory_space<vmem>>, %arg2: memref<36x32xbf16, #tpu.memory_space<vmem>>, %arg3: memref<64x32xbf16, #tpu.memory_space<vmem>>, %arg4: memref<8x32xf32, #tpu.memory_space<vmem>>) attributes {dimension_semantics = [#tpu.dimension_semantics<parallel>], iteration_bounds = array<i64: 2>, scalar_prefetch = 0 : i64, scratch_operands = 0 : i64, tpu.core_type = #tpu.core_type<tc>, window_params = [{transform_indices = @transform_0, window_bounds = array<i64: 64, 36>}, {pipeline_mode = #tpu.pipeline_mode<synchronous>, transform_indices = @transform_1, window_bounds = array<i64: 36, 32>}, {transform_indices = @transform_2, window_bounds = array<i64: 64, 32>}, {transform_indices = @transform_3, window_bounds = array<i64: 8, 32>}]} {
    %c0 = arith.constant 0 : index
    %c0_0 = arith.constant 0 : index
    %0 = vector.load %arg1[%c0, %c0_0] : memref<64x36xbf16, #tpu.memory_space<vmem>>, vector<64x36xbf16>
    %c0_1 = arith.constant 0 : index
    %c0_2 = arith.constant 0 : index
    %1 = vector.load %arg2[%c0_1, %c0_2] : memref<36x32xbf16, #tpu.memory_space<vmem>>, vector<36x32xbf16>
    %cst = arith.constant dense<0.000000e+00> : vector<64x32xf32>
    %2 = tpu.matmul %0, %1, %cst {dimension_numbers = #tpu.dot_dimension_numbers<[1], [0], [0], [1], [0, 0, 1, 1], [], []>} : vector<64x36xbf16>, vector<36x32xbf16>, vector<64x32xf32> -> vector<64x32xf32>
    %cst_3 = arith.constant 0.000000e+00 : f32
    %3 = vector.broadcast %cst_3 : f32 to vector<8x32xf32>
    %c0_4 = arith.constant 0 : index
    %c0_5 = arith.constant 0 : index
    %4 = vector.load %arg4[%c0_4, %c0_5] : memref<8x32xf32, #tpu.memory_space<vmem>>, vector<8x32xf32>
    tpu.vector_store %arg4[%c0_4, %c0_5], %3 {strides = array<i32>} : memref<8x32xf32, #tpu.memory_space<vmem>>, vector<8x32xf32>,
    %cst_6 = arith.constant dense<0.000000e+00> : vector<32xf32>
    %5 = vector.multi_reduction <add>, %2, %cst_6 [0] : vector<64x32xf32> to vector<32xf32>
    %6 = vector.shape_cast %5 : vector<32xf32> to vector<1x32xf32>
    %c0_7 = arith.constant 0 : index
    %c0_8 = arith.constant 0 : index
    %7 = vector.load %arg4[%c0_7, %c0_8] : memref<8x32xf32, #tpu.memory_space<vmem>>, vector<1x32xf32>
    tpu.vector_store %arg4[%c0_7, %c0_8], %6 {strides = array<i32>} : memref<8x32xf32, #tpu.memory_space<vmem>>, vector<1x32xf32>,
    %8 = arith.mulf %2, %2 : vector<64x32xf32>
    %cst_9 = arith.constant dense<0.000000e+00> : vector<32xf32>
    %9 = vector.multi_reduction <add>, %8, %cst_9 [0] : vector<64x32xf32> to vector<32xf32>
    %10 = vector.shape_cast %9 : vector<32xf32> to vector<1x32xf32>
    %c1 = arith.constant 1 : index
    %c0_10 = arith.constant 0 : index
    %11 = vector.load %arg4[%c1, %c0_10] : memref<8x32xf32, #tpu.memory_space<vmem>>, vector<1x32xf32>
    tpu.vector_store %arg4[%c1, %c0_10], %10 {strides = array<i32>} : memref<8x32xf32, #tpu.memory_space<vmem>>, vector<1x32xf32>,
    %12 = arith.truncf %2 : vector<64x32xf32> to vector<64x32xbf16>
    %c0_11 = arith.constant 0 : index
    %c0_12 = arith.constant 0 : index
    %13 = vector.load %arg3[%c0_11, %c0_12] : memref<64x32xbf16, #tpu.memory_space<vmem>>, vector<64x32xbf16>
    tpu.vector_store %arg3[%c0_11, %c0_12], %12 {strides = array<i32>} : memref<64x32xbf16, #tpu.memory_space<vmem>>, vector<64x32xbf16>,
    return
  }
  func.func @transform_0(%arg0: i32) -> (i32, i32) {
    %c0_i32 = arith.constant 0 : i32
    %c0_i32_0 = arith.constant 0 : i32
    return %arg0, %c0_i32 : i32, i32
  }
  func.func @transform_1(%arg0: i32) -> (i32, i32) {
    %c0_i32 = arith.constant 0 : i32
    %c0_i32_0 = arith.constant 0 : i32
    %c0_i32_1 = arith.constant 0 : i32
    return %c0_i32, %c0_i32_0 : i32, i32
  }
  func.func @transform_2(%arg0: i32) -> (i32, i32) {
    %c0_i32 = arith.constant 0 : i32
    %c0_i32_0 = arith.constant 0 : i32
    return %arg0, %c0_i32 : i32, i32
  }
  func.func @transform_3(%arg0: i32) -> (i32, i32) {
    %c0_i32 = arith.constant 0 : i32
    %c0_i32_0 = arith.constant 0 : i32
    return %arg0, %c0_i32 : i32, i32
  }
}

module attributes {stable_mosaic.version = 11 : i64} {
  func.func @_bn_relu_kernel(%arg0: i32, %arg1: memref<64x32xbf16, #tpu.memory_space<vmem>>, %arg2: memref<2x32xf32, #tpu.memory_space<vmem>>, %arg3: memref<64x32xbf16, #tpu.memory_space<vmem>>) attributes {dimension_semantics = [#tpu.dimension_semantics<parallel>], iteration_bounds = array<i64: 2>, scalar_prefetch = 0 : i64, scratch_operands = 0 : i64, tpu.core_type = #tpu.core_type<tc>, window_params = [{transform_indices = @transform_0, window_bounds = array<i64: 64, 32>}, {pipeline_mode = #tpu.pipeline_mode<synchronous>, transform_indices = @transform_1, window_bounds = array<i64: 2, 32>}, {transform_indices = @transform_2, window_bounds = array<i64: 64, 32>}]} {
    %c0 = arith.constant 0 : index
    %c0_0 = arith.constant 0 : index
    %0 = vector.load %arg1[%c0, %c0_0] : memref<64x32xbf16, #tpu.memory_space<vmem>>, vector<64x32xbf16>
    %1 = arith.extf %0 : vector<64x32xbf16> to vector<64x32xf32>
    %c0_1 = arith.constant 0 : index
    %c0_2 = arith.constant 0 : index
    %2 = vector.load %arg2[%c0_1, %c0_2] : memref<2x32xf32, #tpu.memory_space<vmem>>, vector<1x32xf32>
    %3 = vector.broadcast %2 : vector<1x32xf32> to vector<64x32xf32>
    %4 = arith.mulf %1, %3 : vector<64x32xf32>
    %c1 = arith.constant 1 : index
    %c0_3 = arith.constant 0 : index
    %5 = vector.load %arg2[%c1, %c0_3] : memref<2x32xf32, #tpu.memory_space<vmem>>, vector<1x32xf32>
    %6 = vector.broadcast %5 : vector<1x32xf32> to vector<64x32xf32>
    %7 = arith.addf %4, %6 : vector<64x32xf32>
    %cst = arith.constant 0.000000e+00 : f32
    %8 = vector.broadcast %cst : f32 to vector<64x32xf32>
    %9 = arith.maximumf %7, %8 : vector<64x32xf32>
    %10 = arith.truncf %9 : vector<64x32xf32> to vector<64x32xbf16>
    %c0_4 = arith.constant 0 : index
    %c0_5 = arith.constant 0 : index
    %11 = vector.load %arg3[%c0_4, %c0_5] : memref<64x32xbf16, #tpu.memory_space<vmem>>, vector<64x32xbf16>
    tpu.vector_store %arg3[%c0_4, %c0_5], %10 {strides = array<i32>} : memref<64x32xbf16, #tpu.memory_space<vmem>>, vector<64x32xbf16>,
    return
  }
  func.func @transform_0(%arg0: i32) -> (i32, i32) {
    %c0_i32 = arith.constant 0 : i32
    %c0_i32_0 = arith.constant 0 : i32
    return %arg0, %c0_i32 : i32, i32
  }
  func.func @transform_1(%arg0: i32) -> (i32, i32) {
    %c0_i32 = arith.constant 0 : i32
    %c0_i32_0 = arith.constant 0 : i32
    %c0_i32_1 = arith.constant 0 : i32
    return %c0_i32, %c0_i32_0 : i32, i32
  }
  func.func @transform_2(%arg0: i32) -> (i32, i32) {
    %c0_i32 = arith.constant 0 : i32
    %c0_i32_0 = arith.constant 0 : i32
    return %arg0, %c0_i32 : i32, i32
  }
}

module attributes {stable_mosaic.version = 11 : i64} {
  func.func @_conv_stats_kernel(%arg0: i32, %arg1: memref<64x288xbf16, #tpu.memory_space<vmem>>, %arg2: memref<288x32xbf16, #tpu.memory_space<vmem>>, %arg3: memref<64x32xbf16, #tpu.memory_space<vmem>>, %arg4: memref<8x32xf32, #tpu.memory_space<vmem>>) attributes {dimension_semantics = [#tpu.dimension_semantics<parallel>], iteration_bounds = array<i64: 2>, scalar_prefetch = 0 : i64, scratch_operands = 0 : i64, tpu.core_type = #tpu.core_type<tc>, window_params = [{transform_indices = @transform_0, window_bounds = array<i64: 64, 288>}, {pipeline_mode = #tpu.pipeline_mode<synchronous>, transform_indices = @transform_1, window_bounds = array<i64: 288, 32>}, {transform_indices = @transform_2, window_bounds = array<i64: 64, 32>}, {transform_indices = @transform_3, window_bounds = array<i64: 8, 32>}]} {
    %c0 = arith.constant 0 : index
    %c0_0 = arith.constant 0 : index
    %0 = vector.load %arg1[%c0, %c0_0] : memref<64x288xbf16, #tpu.memory_space<vmem>>, vector<64x288xbf16>
    %c0_1 = arith.constant 0 : index
    %c0_2 = arith.constant 0 : index
    %1 = vector.load %arg2[%c0_1, %c0_2] : memref<288x32xbf16, #tpu.memory_space<vmem>>, vector<288x32xbf16>
    %cst = arith.constant dense<0.000000e+00> : vector<64x32xf32>
    %2 = tpu.matmul %0, %1, %cst {dimension_numbers = #tpu.dot_dimension_numbers<[1], [0], [0], [1], [0, 0, 1, 1], [], []>} : vector<64x288xbf16>, vector<288x32xbf16>, vector<64x32xf32> -> vector<64x32xf32>
    %cst_3 = arith.constant 0.000000e+00 : f32
    %3 = vector.broadcast %cst_3 : f32 to vector<8x32xf32>
    %c0_4 = arith.constant 0 : index
    %c0_5 = arith.constant 0 : index
    %4 = vector.load %arg4[%c0_4, %c0_5] : memref<8x32xf32, #tpu.memory_space<vmem>>, vector<8x32xf32>
    tpu.vector_store %arg4[%c0_4, %c0_5], %3 {strides = array<i32>} : memref<8x32xf32, #tpu.memory_space<vmem>>, vector<8x32xf32>,
    %cst_6 = arith.constant dense<0.000000e+00> : vector<32xf32>
    %5 = vector.multi_reduction <add>, %2, %cst_6 [0] : vector<64x32xf32> to vector<32xf32>
    %6 = vector.shape_cast %5 : vector<32xf32> to vector<1x32xf32>
    %c0_7 = arith.constant 0 : index
    %c0_8 = arith.constant 0 : index
    %7 = vector.load %arg4[%c0_7, %c0_8] : memref<8x32xf32, #tpu.memory_space<vmem>>, vector<1x32xf32>
    tpu.vector_store %arg4[%c0_7, %c0_8], %6 {strides = array<i32>} : memref<8x32xf32, #tpu.memory_space<vmem>>, vector<1x32xf32>,
    %8 = arith.mulf %2, %2 : vector<64x32xf32>
    %cst_9 = arith.constant dense<0.000000e+00> : vector<32xf32>
    %9 = vector.multi_reduction <add>, %8, %cst_9 [0] : vector<64x32xf32> to vector<32xf32>
    %10 = vector.shape_cast %9 : vector<32xf32> to vector<1x32xf32>
    %c1 = arith.constant 1 : index
    %c0_10 = arith.constant 0 : index
    %11 = vector.load %arg4[%c1, %c0_10] : memref<8x32xf32, #tpu.memory_space<vmem>>, vector<1x32xf32>
    tpu.vector_store %arg4[%c1, %c0_10], %10 {strides = array<i32>} : memref<8x32xf32, #tpu.memory_space<vmem>>, vector<1x32xf32>,
    %12 = arith.truncf %2 : vector<64x32xf32> to vector<64x32xbf16>
    %c0_11 = arith.constant 0 : index
    %c0_12 = arith.constant 0 : index
    %13 = vector.load %arg3[%c0_11, %c0_12] : memref<64x32xbf16, #tpu.memory_space<vmem>>, vector<64x32xbf16>
    tpu.vector_store %arg3[%c0_11, %c0_12], %12 {strides = array<i32>} : memref<64x32xbf16, #tpu.memory_space<vmem>>, vector<64x32xbf16>,
    return
  }
  func.func @transform_0(%arg0: i32) -> (i32, i32) {
    %c0_i32 = arith.constant 0 : i32
    %c0_i32_0 = arith.constant 0 : i32
    return %arg0, %c0_i32 : i32, i32
  }
  func.func @transform_1(%arg0: i32) -> (i32, i32) {
    %c0_i32 = arith.constant 0 : i32
    %c0_i32_0 = arith.constant 0 : i32
    %c0_i32_1 = arith.constant 0 : i32
    return %c0_i32, %c0_i32_0 : i32, i32
  }
  func.func @transform_2(%arg0: i32) -> (i32, i32) {
    %c0_i32 = arith.constant 0 : i32
    %c0_i32_0 = arith.constant 0 : i32
    return %arg0, %c0_i32 : i32, i32
  }
  func.func @transform_3(%arg0: i32) -> (i32, i32) {
    %c0_i32 = arith.constant 0 : i32
    %c0_i32_0 = arith.constant 0 : i32
    return %arg0, %c0_i32 : i32, i32
  }
}

module attributes {stable_mosaic.version = 11 : i64} {
  func.func @_conv_stats_kernel(%arg0: i32, %arg1: memref<16x288xbf16, #tpu.memory_space<vmem>>, %arg2: memref<288x64xbf16, #tpu.memory_space<vmem>>, %arg3: memref<16x64xbf16, #tpu.memory_space<vmem>>, %arg4: memref<8x64xf32, #tpu.memory_space<vmem>>) attributes {dimension_semantics = [#tpu.dimension_semantics<parallel>], iteration_bounds = array<i64: 2>, scalar_prefetch = 0 : i64, scratch_operands = 0 : i64, tpu.core_type = #tpu.core_type<tc>, window_params = [{transform_indices = @transform_0, window_bounds = array<i64: 16, 288>}, {pipeline_mode = #tpu.pipeline_mode<synchronous>, transform_indices = @transform_1, window_bounds = array<i64: 288, 64>}, {transform_indices = @transform_2, window_bounds = array<i64: 16, 64>}, {transform_indices = @transform_3, window_bounds = array<i64: 8, 64>}]} {
    %c0 = arith.constant 0 : index
    %c0_0 = arith.constant 0 : index
    %0 = vector.load %arg1[%c0, %c0_0] : memref<16x288xbf16, #tpu.memory_space<vmem>>, vector<16x288xbf16>
    %c0_1 = arith.constant 0 : index
    %c0_2 = arith.constant 0 : index
    %1 = vector.load %arg2[%c0_1, %c0_2] : memref<288x64xbf16, #tpu.memory_space<vmem>>, vector<288x64xbf16>
    %cst = arith.constant dense<0.000000e+00> : vector<16x64xf32>
    %2 = tpu.matmul %0, %1, %cst {dimension_numbers = #tpu.dot_dimension_numbers<[1], [0], [0], [1], [0, 0, 1, 1], [], []>} : vector<16x288xbf16>, vector<288x64xbf16>, vector<16x64xf32> -> vector<16x64xf32>
    %cst_3 = arith.constant 0.000000e+00 : f32
    %3 = vector.broadcast %cst_3 : f32 to vector<8x64xf32>
    %c0_4 = arith.constant 0 : index
    %c0_5 = arith.constant 0 : index
    %4 = vector.load %arg4[%c0_4, %c0_5] : memref<8x64xf32, #tpu.memory_space<vmem>>, vector<8x64xf32>
    tpu.vector_store %arg4[%c0_4, %c0_5], %3 {strides = array<i32>} : memref<8x64xf32, #tpu.memory_space<vmem>>, vector<8x64xf32>,
    %cst_6 = arith.constant dense<0.000000e+00> : vector<64xf32>
    %5 = vector.multi_reduction <add>, %2, %cst_6 [0] : vector<16x64xf32> to vector<64xf32>
    %6 = vector.shape_cast %5 : vector<64xf32> to vector<1x64xf32>
    %c0_7 = arith.constant 0 : index
    %c0_8 = arith.constant 0 : index
    %7 = vector.load %arg4[%c0_7, %c0_8] : memref<8x64xf32, #tpu.memory_space<vmem>>, vector<1x64xf32>
    tpu.vector_store %arg4[%c0_7, %c0_8], %6 {strides = array<i32>} : memref<8x64xf32, #tpu.memory_space<vmem>>, vector<1x64xf32>,
    %8 = arith.mulf %2, %2 : vector<16x64xf32>
    %cst_9 = arith.constant dense<0.000000e+00> : vector<64xf32>
    %9 = vector.multi_reduction <add>, %8, %cst_9 [0] : vector<16x64xf32> to vector<64xf32>
    %10 = vector.shape_cast %9 : vector<64xf32> to vector<1x64xf32>
    %c1 = arith.constant 1 : index
    %c0_10 = arith.constant 0 : index
    %11 = vector.load %arg4[%c1, %c0_10] : memref<8x64xf32, #tpu.memory_space<vmem>>, vector<1x64xf32>
    tpu.vector_store %arg4[%c1, %c0_10], %10 {strides = array<i32>} : memref<8x64xf32, #tpu.memory_space<vmem>>, vector<1x64xf32>,
    %12 = arith.truncf %2 : vector<16x64xf32> to vector<16x64xbf16>
    %c0_11 = arith.constant 0 : index
    %c0_12 = arith.constant 0 : index
    %13 = vector.load %arg3[%c0_11, %c0_12] : memref<16x64xbf16, #tpu.memory_space<vmem>>, vector<16x64xbf16>
    tpu.vector_store %arg3[%c0_11, %c0_12], %12 {strides = array<i32>} : memref<16x64xbf16, #tpu.memory_space<vmem>>, vector<16x64xbf16>,
    return
  }
  func.func @transform_0(%arg0: i32) -> (i32, i32) {
    %c0_i32 = arith.constant 0 : i32
    %c0_i32_0 = arith.constant 0 : i32
    return %arg0, %c0_i32 : i32, i32
  }
  func.func @transform_1(%arg0: i32) -> (i32, i32) {
    %c0_i32 = arith.constant 0 : i32
    %c0_i32_0 = arith.constant 0 : i32
    %c0_i32_1 = arith.constant 0 : i32
    return %c0_i32, %c0_i32_0 : i32, i32
  }
  func.func @transform_2(%arg0: i32) -> (i32, i32) {
    %c0_i32 = arith.constant 0 : i32
    %c0_i32_0 = arith.constant 0 : i32
    return %arg0, %c0_i32 : i32, i32
  }
  func.func @transform_3(%arg0: i32) -> (i32, i32) {
    %c0_i32 = arith.constant 0 : i32
    %c0_i32_0 = arith.constant 0 : i32
    return %arg0, %c0_i32 : i32, i32
  }
}

module attributes {stable_mosaic.version = 11 : i64} {
  func.func @_bn_relu_kernel(%arg0: i32, %arg1: memref<16x64xbf16, #tpu.memory_space<vmem>>, %arg2: memref<2x64xf32, #tpu.memory_space<vmem>>, %arg3: memref<16x64xf32, #tpu.memory_space<vmem>>) attributes {dimension_semantics = [#tpu.dimension_semantics<parallel>], iteration_bounds = array<i64: 2>, scalar_prefetch = 0 : i64, scratch_operands = 0 : i64, tpu.core_type = #tpu.core_type<tc>, window_params = [{transform_indices = @transform_0, window_bounds = array<i64: 16, 64>}, {pipeline_mode = #tpu.pipeline_mode<synchronous>, transform_indices = @transform_1, window_bounds = array<i64: 2, 64>}, {transform_indices = @transform_2, window_bounds = array<i64: 16, 64>}]} {
    %c0 = arith.constant 0 : index
    %c0_0 = arith.constant 0 : index
    %0 = vector.load %arg1[%c0, %c0_0] : memref<16x64xbf16, #tpu.memory_space<vmem>>, vector<16x64xbf16>
    %1 = arith.extf %0 : vector<16x64xbf16> to vector<16x64xf32>
    %c0_1 = arith.constant 0 : index
    %c0_2 = arith.constant 0 : index
    %2 = vector.load %arg2[%c0_1, %c0_2] : memref<2x64xf32, #tpu.memory_space<vmem>>, vector<1x64xf32>
    %3 = vector.broadcast %2 : vector<1x64xf32> to vector<16x64xf32>
    %4 = arith.mulf %1, %3 : vector<16x64xf32>
    %c1 = arith.constant 1 : index
    %c0_3 = arith.constant 0 : index
    %5 = vector.load %arg2[%c1, %c0_3] : memref<2x64xf32, #tpu.memory_space<vmem>>, vector<1x64xf32>
    %6 = vector.broadcast %5 : vector<1x64xf32> to vector<16x64xf32>
    %7 = arith.addf %4, %6 : vector<16x64xf32>
    %cst = arith.constant 0.000000e+00 : f32
    %8 = vector.broadcast %cst : f32 to vector<16x64xf32>
    %9 = arith.maximumf %7, %8 : vector<16x64xf32>
    %c0_4 = arith.constant 0 : index
    %c0_5 = arith.constant 0 : index
    %10 = vector.load %arg3[%c0_4, %c0_5] : memref<16x64xf32, #tpu.memory_space<vmem>>, vector<16x64xf32>
    tpu.vector_store %arg3[%c0_4, %c0_5], %9 {strides = array<i32>} : memref<16x64xf32, #tpu.memory_space<vmem>>, vector<16x64xf32>,
    return
  }
  func.func @transform_0(%arg0: i32) -> (i32, i32) {
    %c0_i32 = arith.constant 0 : i32
    %c0_i32_0 = arith.constant 0 : i32
    return %arg0, %c0_i32 : i32, i32
  }
  func.func @transform_1(%arg0: i32) -> (i32, i32) {
    %c0_i32 = arith.constant 0 : i32
    %c0_i32_0 = arith.constant 0 : i32
    %c0_i32_1 = arith.constant 0 : i32
    return %c0_i32, %c0_i32_0 : i32, i32
  }
  func.func @transform_2(%arg0: i32) -> (i32, i32) {
    %c0_i32 = arith.constant 0 : i32
    %c0_i32_0 = arith.constant 0 : i32
    return %arg0, %c0_i32 : i32, i32
  }
}

</mosaic_0001>

<llo_original>
// kernel: _forward.7
$region0: #{_forward.7}
  #allocation0 [shape = 'u32[]', space=smem, size = 0x4, offset = 0x4, fixed_abs, tag = 'smem constant byte address 0x4 - core index']
  #allocation1 [shape = 'u32[144,128]{1,0:T(1,128)}', space=vmem, size = 0x12000, scoped, tag = 'internal scratch']
  %s0 = inlined_call_operand.vmem [shape: bf16[128,32], index: 0, kind: input, shape index: {}]
  %s1 = inlined_call_operand.vmem [shape: f32[2,32], index: 1, kind: input, shape index: {}]
  %s2 = inlined_call_operand.vmem [shape: bf16[128,32], index: 2, kind: output, shape index: {}]
  %s3 = sld [smem:[#allocation0]]
  $region41: #{_forward.7} parent=0
    _
  %s5 = ssub.s32 1, %s3
  %s6 = scalar_select 0, %s5, %s3
  loop: start=0, step=1, limit=4
  $region2: #{_forward.7} parent=0 // loop_pre_header
    _
  $region3: #{_forward.7} parent=0 // loop_header
    %s8 = sphi 0, %s12
    %p9 = scmp.ge.s32.totalorder %s8, 4
    %s18 = sphi 0, %s20
    %s21 = sphi 0, %s18
    %s22 = sphi 0, %s21
    %s38 = sphi 0, %s22
    %s42 = sphi 0, %s42
    %s44 = sphi 0, %s42
    %s45 = sphi 0, %s44
    %s59 = sphi 0, %s45
    %s65 = sphi 0, %s67
    %s68 = sphi 0, %s65
    %s69 = sphi 0, %s68
    %s85 = sphi 0, %s69
  $region4: #{_forward.7} parent=0 // loop_header_branch
    %11 = sbr.rel (%p9) target = $region8
  $region5: #{_forward.7} parent=0 // loop_body
    %s13 = ssub.s32 %s8, 1
    %s14 = ssub.s32 %s8, 2
    %s15 = sadd.s32 %s8, 1
    %s16 = ssub.s32 %s8, %s15
    %p17 = scmp.eq.s32.totalorder %s16, 0
    %s19 = sadd.s32 %s18, 1
    %s20 = scalar_select %p17, %s18, %s19
    %p23 = pneg %p17
    %p24 = scmp.eq.s32.totalorder %s8, 1
    %p25 = por %p23, %p24
    %p26 = scmp.ne.s32.totalorder %s18, %s21
    %p27 = scmp.eq.s32.totalorder %s8, 0
    %p28 = por %p26, %p27
    %p29 = scmp.ne.s32.totalorder %s18, %s21
    %p30 = scmp.eq.s32.totalorder %s13, 1
    %p31 = por %p29, %p30
    %p32 = scmp.ne.s32.totalorder %s21, %s22
    %p33 = scmp.eq.s32.totalorder %s13, 0
    %p34 = por %p32, %p33
    %p35 = scmp.ne.s32.totalorder %s21, %s22
    %p36 = scmp.eq.s32.totalorder %s14, 1
    %p37 = por %p35, %p36
    %p39 = scmp.ne.s32.totalorder %s22, %s38
    %p40 = scmp.eq.s32.totalorder %s14, 0
    %p41 = por %p39, %p40
    %s43 = sadd.s32 %s42, 1
    %p46 = scmp.eq.s32.totalorder %s8, 1
    %p47 = scmp.ne.s32.totalorder %s42, %s44
    %p48 = scmp.eq.s32.totalorder %s8, 0
    %p49 = por %p47, %p48
    %p50 = scmp.ne.s32.totalorder %s42, %s44
    %p51 = scmp.eq.s32.totalorder %s13, 1
    %p52 = por %p50, %p51
    %p53 = scmp.ne.s32.totalorder %s44, %s45
    %p54 = scmp.eq.s32.totalorder %s13, 0
    %p55 = por %p53, %p54
    %p56 = scmp.ne.s32.totalorder %s44, %s45
    %p57 = scmp.eq.s32.totalorder %s14, 1
    %p58 = por %p56, %p57
    %p60 = scmp.ne.s32.totalorder %s45, %s59
    %p61 = scmp.eq.s32.totalorder %s14, 0
    %p62 = por %p60, %p61
    %s63 = ssub.s32 %s8, %s15
    %p64 = scmp.eq.s32.totalorder %s63, 0
    %s66 = sadd.s32 %s65, 1
    %s67 = scalar_select %p64, %s65, %s66
    %p70 = pneg %p64
    %p71 = scmp.eq.s32.totalorder %s8, 1
    %p72 = por %p70, %p71
    %p73 = scmp.ne.s32.totalorder %s65, %s68
    %p74 = scmp.eq.s32.totalorder %s8, 0
    %p75 = por %p73, %p74
    %p76 = scmp.ne.s32.totalorder %s65, %s68
    %p77 = scmp.eq.s32.totalorder %s13, 1
    %p78 = por %p76, %p77
    %p79 = scmp.ne.s32.totalorder %s68, %s69
    %p80 = scmp.eq.s32.totalorder %s13, 0
    %p81 = por %p79, %p80
    %p82 = scmp.ne.s32.totalorder %s68, %s69
    %p83 = scmp.eq.s32.totalorder %s14, 1
    %p84 = por %p82, %p83
    %p86 = scmp.ne.s32.totalorder %s69, %s85
    %p87 = scmp.eq.s32.totalorder %s14, 0
    %p88 = por %p86, %p87
    %p89 = scmp.le.s32.totalorder 1, %s8
    %p90 = scmp.lt.s32.totalorder %s8, 3
    %p91 = pnand %p89, %p90
    %p92 = pneg %p91
    // Predicated region
    $region9: #{_forward.7} parent=5 // pred_check
      _
    $region10: #{_forward.7} parent=5 // pred_check_branch
      %94 = sbr.rel (%p91) target = $region12
    $region11: #{_forward.7} parent=5 // pred_region
      %s95 = ssub.s32 %s8, 1
      // Predicated region
      $region13: #{_forward.7} parent=11 // pred_check
        %p96 = pneg %p55
      $region14: #{_forward.7} parent=11 // pred_check_branch
        %98 = sbr.rel (%p96) target = $region16
      $region15: #{_forward.7} parent=11 // pred_region
        _
      $region16: #{_forward.7} parent=11 // pred_fallthru
        _
    $region12: #{_forward.7} parent=5 // pred_fallthru
      _
    %p99 = scmp.lt.s32.totalorder %s8, 2
    // Predicated region
    $region17: #{_forward.7} parent=5 // pred_check
      %p100 = pneg %p99
    $region18: #{_forward.7} parent=5 // pred_check_branch
      %102 = sbr.rel (%p100) target = $region20
    $region19: #{_forward.7} parent=5 // pred_region
      // Predicated region
      $region21: #{_forward.7} parent=19 // pred_check
        %p103 = pneg %p28
      $region22: #{_forward.7} parent=19 // pred_check_branch
        %105 = sbr.rel (%p103) target = $region24
      $region23: #{_forward.7} parent=19 // pred_region
        %s106 = smul.u32 8, %s8
        %p107 = scmp.lt.s32.totalorder %s106, 15
        %s108 = scalar_select %p107, %s106, 15
        %s109 = smul.addr %s108, 4
        %s110 = scalar_lea.vmem %s0, %s109
        %s111 = smul.u32 8, %s8
      $region24: #{_forward.7} parent=19 // pred_fallthru
        _
    $region20: #{_forward.7} parent=5 // pred_fallthru
      _
    %p112 = scmp.le.s32.totalorder 1, %s8
    %p113 = scmp.lt.s32.totalorder %s8, 3
    %p114 = pnand %p112, %p113
    %p115 = pneg %p114
    // Predicated region
    $region25: #{_forward.7} parent=5 // pred_check
      _
    $region26: #{_forward.7} parent=5 // pred_check_branch
      %117 = sbr.rel (%p114) target = $region28
    $region27: #{_forward.7} parent=5 // pred_region
      %s118 = ssub.s32 %s8, 1
      %s119 = smul.u32 8, %s13
      %p120 = scmp.lt.s32.totalorder %s119, 15
      %s121 = scalar_select %p120, %s119, 15
      %s122 = smul.addr %s121, 4
      %s123 = scalar_lea.vmem %s0, %s122
      %p124 = pneg %p34
      %p125 = pneg %p31
      %p126 = pneg %p55
      %p127 = pneg %p52
      %p128 = pneg %p81
      %p129 = pneg %p78
      %s130 = smul.u32 8, %s13
      %p131 = scmp.lt.s32.totalorder %s130, 15
      %s132 = scalar_select %p131, %s130, 15
      %s133 = smul.addr %s132, 4
      %s134 = scalar_lea.vmem %s2, %s133
      %s135 = smul.u32 8, %s13
      %p136 = scmp.lt.s32.totalorder %s135, 15
      %s137 = scalar_select %p136, %s135, 15
      %s138 = smul.addr %s137, 4
      %s139 = scalar_lea.vmem %s0, %s138
      %s140 = smul.u32 8, %s13
      %s141 = smul.u32 8, %s13
      %p142 = scmp.lt.s32.totalorder %s141, 15
      %s143 = scalar_select %p142, %s141, 15
      %s144 = smul.addr %s143, 4
      %s145 = scalar_lea.vmem %s2, %s144
      %s146 = smul.u32 8, %s13
      %v147 = vld [vmem:[%s139] sm:$0xf]
      %v148 = vld [vmem:[%s139 + $0x4] sm:$0xf]
      %v149 = vld [vmem:[%s139 + $0x8] sm:$0xf]
      %v150 = vld [vmem:[%s139 + $0xc] sm:$0xf]
      %v151 = vld [vmem:[%s139 + $0x10] sm:$0xf]
      %v152 = vld [vmem:[%s139 + $0x14] sm:$0xf]
      %v153 = vld [vmem:[%s139 + $0x18] sm:$0xf]
      %v154 = vld [vmem:[%s139 + $0x1c] sm:$0xf]
      %v155 = vunpack.c.l.bf16 %v147
      %v156 = vunpack.c.l.bf16 %v148
      %v157 = vunpack.c.l.bf16 %v149
      %v158 = vunpack.c.l.bf16 %v150
      %v159 = vunpack.c.l.bf16 %v151
      %v160 = vunpack.c.l.bf16 %v152
      %v161 = vunpack.c.l.bf16 %v153
      %v162 = vunpack.c.l.bf16 %v154
      %v163 = vld [vmem:[%s1] sm:$0x1]
      %v164 = vlaneseq
      %v165 = vshrl.u32 %v164, 7
      %v166 = vsub.s32 0, %v165
      %v167 = vrot.slane %v163, %v166
      %v168 = vmul.f32 %v155, %v167
      %v169 = vmul.f32 %v156, %v167
      %v170 = vmul.f32 %v157, %v167
      %v171 = vmul.f32 %v158, %v167
      %v172 = vmul.f32 %v159, %v167
      %v173 = vmul.f32 %v160, %v167
      %v174 = vmul.f32 %v161, %v167
      %v175 = vmul.f32 %v162, %v167
      %v176 = vld [vmem:[%s1 + $0x1] sm:$0x1]
      %v177 = vlaneseq
      %v178 = vshrl.u32 %v177, 7
      %v179 = vsub.s32 0, %v178
      %v180 = vrot.slane %v176, %v179
      %v181 = vadd.f32 %v168, %v180
      %v182 = vadd.f32 %v169, %v180
      %v183 = vadd.f32 %v170, %v180
      %v184 = vadd.f32 %v171, %v180
      %v185 = vadd.f32 %v172, %v180
      %v186 = vadd.f32 %v173, %v180
      %v187 = vadd.f32 %v174, %v180
      %v188 = vadd.f32 %v175, %v180
      %v189 = vmax.f32 %v181, 0.0
      %v190 = vmax.f32 %v182, 0.0
      %v191 = vmax.f32 %v183, 0.0
      %v192 = vmax.f32 %v184, 0.0
      %v193 = vmax.f32 %v185, 0.0
      %v194 = vmax.f32 %v186, 0.0
      %v195 = vmax.f32 %v187, 0.0
      %v196 = vmax.f32 %v188, 0.0
      %v197 = vpack.c.bf16 %v190, %v189
      %v198 = vpack.c.bf16 %v192, %v191
      %v199 = vpack.c.bf16 %v194, %v193
      %v200 = vpack.c.bf16 %v196, %v195
      %v205 = vunpack.c.l.b16 %v197
      %v206 = vunpack.c.h.b16 %v197
      %v207 = vunpack.c.l.b16 %v198
      %v208 = vunpack.c.h.b16 %v198
      %v209 = vunpack.c.l.b16 %v199
      %v210 = vunpack.c.h.b16 %v199
      %v211 = vunpack.c.l.b16 %v200
      %v212 = vunpack.c.h.b16 %v200
      %v213 = vpack.c.b16 %v205, %v205
      %v214 = vpack.c.b16 %v206, %v206
      %v215 = vpack.c.b16 %v207, %v207
      %v216 = vpack.c.b16 %v208, %v208
      %v217 = vpack.c.b16 %v209, %v209
      %v218 = vpack.c.b16 %v210, %v210
      %v219 = vpack.c.b16 %v211, %v211
      %v220 = vpack.c.b16 %v212, %v212
      %vm229 = vcmask 257024
      %230 = vst.msk [vmem:[%s145] sm:$0xf] %vm229, %v213
      %231 = vst.msk [vmem:[%s145 + $0x4] sm:$0xf] %vm229, %v214
      %232 = vst.msk [vmem:[%s145 + $0x8] sm:$0xf] %vm229, %v215
      %233 = vst.msk [vmem:[%s145 + $0xc] sm:$0xf] %vm229, %v216
      %234 = vst.msk [vmem:[%s145 + $0x10] sm:$0xf] %vm229, %v217
      %235 = vst.msk [vmem:[%s145 + $0x14] sm:$0xf] %vm229, %v218
      %236 = vst.msk [vmem:[%s145 + $0x18] sm:$0xf] %vm229, %v219
      %237 = vst.msk [vmem:[%s145 + $0x1c] sm:$0xf] %vm229, %v220
      %s238 = smul.u32 8, %s13
      %p239 = scmp.lt.s32.totalorder %s238, 15
      %s240 = scalar_select %p239, %s238, 15
      %s241 = smul.addr %s240, 4
      %s242 = scalar_lea.vmem %s2, %s241
      // Predicated region
      $region29: #{_forward.7} parent=27 // pred_check
        %p243 = pneg %p78
      $region30: #{_forward.7} parent=27 // pred_check_branch
        %245 = sbr.rel (%p243) target = $region32
      $region31: #{_forward.7} parent=27 // pred_region
        %s246 = smul.u32 8, %s13
      $region32: #{_forward.7} parent=27 // pred_fallthru
        _
    $region28: #{_forward.7} parent=5 // pred_fallthru
      _
    %p247 = scmp.le.s32.totalorder 2, %s8
    // Predicated region
    $region33: #{_forward.7} parent=5 // pred_check
      %p248 = pneg %p247
    $region34: #{_forward.7} parent=5 // pred_check_branch
      %250 = sbr.rel (%p248) target = $region36
    $region35: #{_forward.7} parent=5 // pred_region
      %s251 = ssub.s32 %s8, 2
      // Predicated region
      $region37: #{_forward.7} parent=35 // pred_check
        %p252 = pneg %p84
      $region38: #{_forward.7} parent=35 // pred_check_branch
        %254 = sbr.rel (%p252) target = $region40
      $region39: #{_forward.7} parent=35 // pred_region
        %s255 = smul.u32 8, %s14
        %p256 = scmp.lt.s32.totalorder %s255, 15
        %s257 = scalar_select %p256, %s255, 15
        %s258 = smul.addr %s257, 4
        %s259 = scalar_lea.vmem %s2, %s258
      $region40: #{_forward.7} parent=35 // pred_fallthru
        _
    $region36: #{_forward.7} parent=5 // pred_fallthru
      _
  $region6: #{_forward.7} parent=0 // loop_footer
    %s12 = sadd.s32 1, %s8
  $region7: #{_forward.7} parent=0 // loop_footer_branch
    %7 = sbr.rel target = $region3
  $region8: #{_forward.7} parent=0 // loop_exit
    _

// kernel: _forward.6
$region0: #{_forward.6}
  #allocation0 [shape = 'u32[]', space=smem, size = 0x4, offset = 0x4, fixed_abs, tag = 'smem constant byte address 0x4 - core index']
  #allocation1 [shape = 'u32[144,128]{1,0:T(1,128)}', space=vmem, size = 0x12000, scoped, tag = 'internal scratch']
  %s0 = inlined_call_operand.vmem [shape: bf16[128,36], index: 0, kind: input, shape index: {}]
  %s1 = inlined_call_operand.vmem [shape: bf16[36,32], index: 1, kind: input, shape index: {}]
  %s2 = inlined_call_operand.vmem [shape: bf16[128,32], index: 2, kind: output, shape index: {0}]
  %s3 = inlined_call_operand.vmem [shape: f32[16,32], index: 3, kind: output, shape index: {1}]
  %4 = xla_tuple %s2, %s3
  %s5 = sld [smem:[#allocation0]]
  $region49: #{_forward.6} parent=0
    _
  %s7 = ssub.s32 1, %s5
  %s8 = scalar_select 0, %s7, %s5
  loop: start=0, step=1, limit=4
  $region2: #{_forward.6} parent=0 // loop_pre_header
    _
  $region3: #{_forward.6} parent=0 // loop_header
    %s10 = sphi 0, %s14
    %p11 = scmp.ge.s32.totalorder %s10, 4
    %s20 = sphi 0, %s22
    %s23 = sphi 0, %s20
    %s24 = sphi 0, %s23
    %s40 = sphi 0, %s24
    %s44 = sphi 0, %s44
    %s46 = sphi 0, %s44
    %s47 = sphi 0, %s46
    %s61 = sphi 0, %s47
    %s67 = sphi 0, %s69
    %s70 = sphi 0, %s67
    %s71 = sphi 0, %s70
    %s87 = sphi 0, %s71
    %s93 = sphi 0, %s95
    %s96 = sphi 0, %s93
    %s97 = sphi 0, %s96
    %s113 = sphi 0, %s97
  $region4: #{_forward.6} parent=0 // loop_header_branch
    %13 = sbr.rel (%p11) target = $region8
  $region5: #{_forward.6} parent=0 // loop_body
    %s15 = ssub.s32 %s10, 1
    %s16 = ssub.s32 %s10, 2
    %s17 = sadd.s32 %s10, 1
    %s18 = ssub.s32 %s10, %s17
    %p19 = scmp.eq.s32.totalorder %s18, 0
    %s21 = sadd.s32 %s20, 1
    %s22 = scalar_select %p19, %s20, %s21
    %p25 = pneg %p19
    %p26 = scmp.eq.s32.totalorder %s10, 1
    %p27 = por %p25, %p26
    %p28 = scmp.ne.s32.totalorder %s20, %s23
    %p29 = scmp.eq.s32.totalorder %s10, 0
    %p30 = por %p28, %p29
    %p31 = scmp.ne.s32.totalorder %s20, %s23
    %p32 = scmp.eq.s32.totalorder %s15, 1
    %p33 = por %p31, %p32
    %p34 = scmp.ne.s32.totalorder %s23, %s24
    %p35 = scmp.eq.s32.totalorder %s15, 0
    %p36 = por %p34, %p35
    %p37 = scmp.ne.s32.totalorder %s23, %s24
    %p38 = scmp.eq.s32.totalorder %s16, 1
    %p39 = por %p37, %p38
    %p41 = scmp.ne.s32.totalorder %s24, %s40
    %p42 = scmp.eq.s32.totalorder %s16, 0
    %p43 = por %p41, %p42
    %s45 = sadd.s32 %s44, 1
    %p48 = scmp.eq.s32.totalorder %s10, 1
    %p49 = scmp.ne.s32.totalorder %s44, %s46
    %p50 = scmp.eq.s32.totalorder %s10, 0
    %p51 = por %p49, %p50
    %p52 = scmp.ne.s32.totalorder %s44, %s46
    %p53 = scmp.eq.s32.totalorder %s15, 1
    %p54 = por %p52, %p53
    %p55 = scmp.ne.s32.totalorder %s46, %s47
    %p56 = scmp.eq.s32.totalorder %s15, 0
    %p57 = por %p55, %p56
    %p58 = scmp.ne.s32.totalorder %s46, %s47
    %p59 = scmp.eq.s32.totalorder %s16, 1
    %p60 = por %p58, %p59
    %p62 = scmp.ne.s32.totalorder %s47, %s61
    %p63 = scmp.eq.s32.totalorder %s16, 0
    %p64 = por %p62, %p63
    %s65 = ssub.s32 %s10, %s17
    %p66 = scmp.eq.s32.totalorder %s65, 0
    %s68 = sadd.s32 %s67, 1
    %s69 = scalar_select %p66, %s67, %s68
    %p72 = pneg %p66
    %p73 = scmp.eq.s32.totalorder %s10, 1
    %p74 = por %p72, %p73
    %p75 = scmp.ne.s32.totalorder %s67, %s70
    %p76 = scmp.eq.s32.totalorder %s10, 0
    %p77 = por %p75, %p76
    %p78 = scmp.ne.s32.totalorder %s67, %s70
    %p79 = scmp.eq.s32.totalorder %s15, 1
    %p80 = por %p78, %p79
    %p81 = scmp.ne.s32.totalorder %s70, %s71
    %p82 = scmp.eq.s32.totalorder %s15, 0
    %p83 = por %p81, %p82
    %p84 = scmp.ne.s32.totalorder %s70, %s71
    %p85 = scmp.eq.s32.totalorder %s16, 1
    %p86 = por %p84, %p85
    %p88 = scmp.ne.s32.totalorder %s71, %s87
    %p89 = scmp.eq.s32.totalorder %s16, 0
    %p90 = por %p88, %p89
    %s91 = ssub.s32 %s10, %s17
    %p92 = scmp.eq.s32.totalorder %s91, 0
    %s94 = sadd.s32 %s93, 1
    %s95 = scalar_select %p92, %s93, %s94
    %p98 = pneg %p92
    %p99 = scmp.eq.s32.totalorder %s10, 1
    %p100 = por %p98, %p99
    %p101 = scmp.ne.s32.totalorder %s93, %s96
    %p102 = scmp.eq.s32.totalorder %s10, 0
    %p103 = por %p101, %p102
    %p104 = scmp.ne.s32.totalorder %s93, %s96
    %p105 = scmp.eq.s32.totalorder %s15, 1
    %p106 = por %p104, %p105
    %p107 = scmp.ne.s32.totalorder %s96, %s97
    %p108 = scmp.eq.s32.totalorder %s15, 0
    %p109 = por %p107, %p108
    %p110 = scmp.ne.s32.totalorder %s96, %s97
    %p111 = scmp.eq.s32.totalorder %s16, 1
    %p112 = por %p110, %p111
    %p114 = scmp.ne.s32.totalorder %s97, %s113
    %p115 = scmp.eq.s32.totalorder %s16, 0
    %p116 = por %p114, %p115
    %p117 = scmp.le.s32.totalorder 1, %s10
    %p118 = scmp.lt.s32.totalorder %s10, 3
    %p119 = pnand %p117, %p118
    %p120 = pneg %p119
    // Predicated region
    $region9: #{_forward.6} parent=5 // pred_check
      _
    $region10: #{_forward.6} parent=5 // pred_check_branch
      %122 = sbr.rel (%p119) target = $region12
    $region11: #{_forward.6} parent=5 // pred_region
      %s123 = ssub.s32 %s10, 1
      // Predicated region
      $region13: #{_forward.6} parent=11 // pred_check
        %p124 = pneg %p57
      $region14: #{_forward.6} parent=11 // pred_check_branch
        %126 = sbr.rel (%p124) target = $region16
      $region15: #{_forward.6} parent=11 // pred_region
        _
      $region16: #{_forward.6} parent=11 // pred_fallthru
        _
    $region12: #{_forward.6} parent=5 // pred_fallthru
      _
    %p127 = scmp.lt.s32.totalorder %s10, 2
    // Predicated region
    $region17: #{_forward.6} parent=5 // pred_check
      %p128 = pneg %p127
    $region18: #{_forward.6} parent=5 // pred_check_branch
      %130 = sbr.rel (%p128) target = $region20
    $region19: #{_forward.6} parent=5 // pred_region
      // Predicated region
      $region21: #{_forward.6} parent=19 // pred_check
        %p131 = pneg %p30
      $region22: #{_forward.6} parent=19 // pred_check_branch
        %133 = sbr.rel (%p131) target = $region24
      $region23: #{_forward.6} parent=19 // pred_region
        %s134 = smul.u32 8, %s10
        %p135 = scmp.lt.s32.totalorder %s134, 15
        %s136 = scalar_select %p135, %s134, 15
        %s137 = smul.addr %s136, 4
        %s138 = scalar_lea.vmem %s0, %s137
        %s139 = smul.u32 8, %s10
      $region24: #{_forward.6} parent=19 // pred_fallthru
        _
    $region20: #{_forward.6} parent=5 // pred_fallthru
      _
    %p140 = scmp.le.s32.totalorder 1, %s10
    %p141 = scmp.lt.s32.totalorder %s10, 3
    %p142 = pnand %p140, %p141
    %p143 = pneg %p142
    // Predicated region
    $region25: #{_forward.6} parent=5 // pred_check
      _
    $region26: #{_forward.6} parent=5 // pred_check_branch
      %145 = sbr.rel (%p142) target = $region28
    $region27: #{_forward.6} parent=5 // pred_region
      %s146 = ssub.s32 %s10, 1
      %s147 = smul.u32 8, %s15
      %p148 = scmp.lt.s32.totalorder %s147, 15
      %s149 = scalar_select %p148, %s147, 15
      %s150 = smul.addr %s149, 4
      %s151 = scalar_lea.vmem %s0, %s150
      %p152 = pneg %p36
      %p153 = pneg %p33
      %p154 = pneg %p57
      %p155 = pneg %p54
      %p156 = pneg %p83
      %p157 = pneg %p80
      %s158 = smul.u32 8, %s15
      %p159 = scmp.lt.s32.totalorder %s158, 15
      %s160 = scalar_select %p159, %s158, 15
      %s161 = smul.addr %s160, 4
      %s162 = scalar_lea.vmem %s2, %s161
      %p163 = pneg %p109
      %p164 = pneg %p106
      %p165 = scmp.lt.s32.totalorder %s15, 1
      %s166 = scalar_select %p165, %s15, 1
      %s167 = smul.addr %s166, 8
      %s168 = scalar_lea.vmem %s3, %s167
      %s169 = smul.u32 8, %s15
      %p170 = scmp.lt.s32.totalorder %s169, 15
      %s171 = scalar_select %p170, %s169, 15
      %s172 = smul.addr %s171, 4
      %s173 = scalar_lea.vmem %s0, %s172
      %s174 = smul.u32 8, %s15
      %s175 = smul.u32 8, %s15
      %p176 = scmp.lt.s32.totalorder %s175, 15
      %s177 = scalar_select %p176, %s175, 15
      %s178 = smul.addr %s177, 4
      %s179 = scalar_lea.vmem %s2, %s178
      %s180 = smul.u32 8, %s15
      %p181 = scmp.lt.s32.totalorder %s15, 1
      %s182 = scalar_select %p181, %s15, 1
      %s183 = smul.addr %s182, 8
      %s184 = scalar_lea.vmem %s3, %s183
      %v186 = vld [vmem:[%s173] sm:$0xf]
      %v187 = vld [vmem:[%s173 + $0x4] sm:$0xf]
      %v188 = vld [vmem:[%s173 + $0x8] sm:$0xf]
      %v189 = vld [vmem:[%s173 + $0xc] sm:$0xf]
      %v190 = vld [vmem:[%s173 + $0x10] sm:$0xf]
      %v191 = vld [vmem:[%s173 + $0x14] sm:$0xf]
      %v192 = vld [vmem:[%s173 + $0x18] sm:$0xf]
      %v193 = vld [vmem:[%s173 + $0x1c] sm:$0xf]
      %v194 = vld [vmem:[%s1] sm:$0xf]
      %v195 = vld [vmem:[%s1 + $0x4] sm:$0xf]
      %v196 = vld [vmem:[%s1 + $0x8] sm:$0xf]
      %v197 = vld [vmem:[%s1 + $0xc] sm:$0xf]
      %v198 = vld [vmem:[%s1 + $0x10] sm:$0x3]
      %v207 = vunpack.c.l.b16 %v186
      %v208 = vunpack.c.l.b16 %v187
      %v209 = vunpack.c.l.b16 %v188
      %v210 = vunpack.c.l.b16 %v189
      %v211 = vunpack.c.l.b16 %v190
      %v212 = vunpack.c.l.b16 %v191
      %v213 = vunpack.c.l.b16 %v192
      %v214 = vunpack.c.l.b16 %v193
      %v215 = vpack.c.b16 %v208, %v207
      %v216 = vpack.c.b16 %v210, %v209
      %v217 = vpack.c.b16 %v212, %v211
      %v218 = vpack.c.b16 %v214, %v213
      %v224 = vunpack.c.l.b16 %v194
      %v225 = vunpack.c.l.b16 %v195
      %v226 = vunpack.c.l.b16 %v196
      %v227 = vunpack.c.l.b16 %v197
      %v228 = vunpack.c.l.b16 %v198
      %v229 = vpack.c.b16 %v225, %v224
      %v230 = vpack.c.b16 %v227, %v226
      %v231 = vpack.c.b16 %v228, %v228
      %vm234 = vcmask 293888
      %v236 = vsel %vm234, %v215, 0
      %v239 = vsel %vm234, %v216, 0
      %v242 = vsel %vm234, %v217, 0
      %v245 = vsel %vm234, %v218, 0
      %vm247 = vcmask 1041408
      %v249 = vsel %vm247, %v231, 0
      %251 = vmatprep.subr.bf16.mxu0 0
      %252 = vmatpush1.bf16.msra.mxu0 %v229
      %253 = vmatprep.subr.bf16.mxu0 0
      %254 = vmatpush1.bf16.msra.mxu0 %v230
      %255 = vmatprep.subr.bf16.mxu0 0
      %256 = vmatpush1.bf16.msra.mxu0 %v249
      %257 = vmatprep.subr.bf16.mxu0 0
      %258 = vmatpush1.bf16.msra.mxu0 0
      %259 = vmatprep.subr.bf16.mxu0 0
      %260 = vmatpush1.bf16.msra.mxu0 0
      %261 = vmatprep.subr.bf16.mxu0 0
      %262 = vmatpush1.bf16.msra.mxu0 0
      %263 = vmatprep.subr.bf16.mxu0 0
      %264 = vmatpush1.bf16.msra.mxu0 0
      %265 = vmatprep.subr.bf16.mxu0 0
      %266 = vmatpush1.bf16.msra.mxu0 0
      %267 = vmatprep.subr.bf16.mxu0 0
      %268 = vmatpush1.bf16.msra.mxu0 0
      %269 = vmatprep.subr.bf16.mxu0 0
      %270 = vmatpush1.bf16.msra.mxu0 0
      %271 = vmatprep.subr.bf16.mxu0 0
      %272 = vmatpush1.bf16.msra.mxu0 0
      %273 = vmatprep.subr.bf16.mxu0 0
      %274 = vmatpush1.bf16.msra.mxu0 0
      %275 = vmatprep.subr.bf16.mxu0 0
      %276 = vmatpush1.bf16.msra.mxu0 0
      %277 = vmatprep.subr.bf16.mxu0 0
      %278 = vmatpush1.bf16.msra.mxu0 0
      %279 = vmatprep.subr.bf16.mxu0 0
      %280 = vmatpush1.bf16.msra.mxu0 0
      %281 = vmatprep.subr.bf16.mxu0 0
      %282 = vmatpush1.bf16.msra.mxu0 0
      %283 = vmatprep.mubr.bf16.mxu0 0
      %284 = vmatmul.mubr.bf16.gmra.mrb[0].mxu0 %v236
      %v285 = vpop.f32.mrb[0].mxu0
      %v286 = vadd.f32 0.0, %v285
      %v287 = vpop.f32.mrb[0].mxu0
      %v288 = vpop.f32.mrb[0].mxu0
      %v289 = vadd.f32 0.0, %v288
      %v290 = vpop.f32.mrb[0].mxu0
      %291 = vmatprep.mubr.bf16.mxu0 0
      %292 = vmatmul.mubr.bf16.gmra.mrb[0].mxu0 %v239
      %v293 = vpop.f32.mrb[0].mxu0
      %v294 = vadd.f32 0.0, %v293
      %v295 = vpop.f32.mrb[0].mxu0
      %v296 = vpop.f32.mrb[0].mxu0
      %v297 = vadd.f32 0.0, %v296
      %v298 = vpop.f32.mrb[0].mxu0
      %299 = vmatprep.mubr.bf16.mxu0 0
      %300 = vmatmul.mubr.bf16.gmra.mrb[0].mxu0 %v242
      %v301 = vpop.f32.mrb[0].mxu0
      %v302 = vadd.f32 0.0, %v301
      %v303 = vpop.f32.mrb[0].mxu0
      %v304 = vpop.f32.mrb[0].mxu0
      %v305 = vadd.f32 0.0, %v304
      %v306 = vpop.f32.mrb[0].mxu0
      %307 = vmatprep.mubr.bf16.mxu0 0
      %308 = vmatmul.mubr.bf16.gmra.mrb[0].mxu0 %v245
      %v309 = vpop.f32.mrb[0].mxu0
      %v310 = vadd.f32 0.0, %v309
      %v311 = vpop.f32.mrb[0].mxu0
      %v312 = vpop.f32.mrb[0].mxu0
      %v313 = vadd.f32 0.0, %v312
      %v314 = vpop.f32.mrb[0].mxu0
      %315 = vdwg.mxu0
      %vm316 = vcmask 261120
      %317 = vst.msk [vmem:[%s184] sm:$0xff] %vm316, 0.0
      %v318 = vsel %vm316, %v286, 0.0
      %v319 = vsel %vm316, %v289, 0.0
      %v320 = vadd.f32 %v318, %v319
      %v321 = vsel %vm316, %v294, 0.0
      %v322 = vadd.f32 %v320, %v321
      %v323 = vsel %vm316, %v297, 0.0
      %v324 = vadd.f32 %v322, %v323
      %v325 = vsel %vm316, %v302, 0.0
      %v326 = vadd.f32 %v324, %v325
      %v327 = vsel %vm316, %v305, 0.0
      %v328 = vadd.f32 %v326, %v327
      %v329 = vsel %vm316, %v310, 0.0
      %v330 = vadd.f32 %v328, %v329
      %v331 = vsel %vm316, %v313, 0.0
      %v332 = vadd.f32 %v330, %v331
      %v333 = vrot.slane %v332, 4
      %v334 = vadd.f32 %v332, %v333
      %v335 = vrot.slane %v334, 2
      %v336 = vadd.f32 %v334, %v335
      %v337 = vrot.slane %v336, 1
      %v338 = vadd.f32 %v336, %v337
      %vm339 = vcmask 253952
      %340 = vst.msk [vmem:[%s184] sm:$0x1] %vm339, %v338
      %v341 = vmul.f32 %v286, %v286
      %v342 = vmul.f32 %v289, %v289
      %v343 = vmul.f32 %v294, %v294
      %v344 = vmul.f32 %v297, %v297
      %v345 = vmul.f32 %v302, %v302
      %v346 = vmul.f32 %v305, %v305
      %v347 = vmul.f32 %v310, %v310
      %v348 = vmul.f32 %v313, %v313
      %v349 = vsel %vm316, %v341, 0.0
      %v350 = vsel %vm316, %v342, 0.0
      %v351 = vadd.f32 %v349, %v350
      %v352 = vsel %vm316, %v343, 0.0
      %v353 = vadd.f32 %v351, %v352
      %v354 = vsel %vm316, %v344, 0.0
      %v355 = vadd.f32 %v353, %v354
      %v356 = vsel %vm316, %v345, 0.0
      %v357 = vadd.f32 %v355, %v356
      %v358 = vsel %vm316, %v346, 0.0
      %v359 = vadd.f32 %v357, %v358
      %v360 = vsel %vm316, %v347, 0.0
      %v361 = vadd.f32 %v359, %v360
      %v362 = vsel %vm316, %v348, 0.0
      %v363 = vadd.f32 %v361, %v362
      %v364 = vrot.slane %v363, 4
      %v365 = vadd.f32 %v363, %v364
      %v366 = vrot.slane %v365, 2
      %v367 = vadd.f32 %v365, %v366
      %v368 = vrot.slane %v367, 1
      %v369 = vadd.f32 %v367, %v368
      %370 = vst.msk [vmem:[%s184 + $0x1] sm:$0x1] %vm339, %v369
      %v371 = vpack.c.bf16 %v289, %v286
      %v372 = vpack.c.bf16 %v297, %v294
      %v373 = vpack.c.bf16 %v305, %v302
      %v374 = vpack.c.bf16 %v313, %v310
      %v379 = vunpack.c.l.b16 %v371
      %v380 = vunpack.c.h.b16 %v371
      %v381 = vunpack.c.l.b16 %v372
      %v382 = vunpack.c.h.b16 %v372
      %v383 = vunpack.c.l.b16 %v373
      %v384 = vunpack.c.h.b16 %v373
      %v385 = vunpack.c.l.b16 %v374
      %v386 = vunpack.c.h.b16 %v374
      %v387 = vpack.c.b16 %v379, %v379
      %v388 = vpack.c.b16 %v380, %v380
      %v389 = vpack.c.b16 %v381, %v381
      %v390 = vpack.c.b16 %v382, %v382
      %v391 = vpack.c.b16 %v383, %v383
      %v392 = vpack.c.b16 %v384, %v384
      %v393 = vpack.c.b16 %v385, %v385
      %v394 = vpack.c.b16 %v386, %v386
      %vm403 = vcmask 257024
      %404 = vst.msk [vmem:[%s179] sm:$0xf] %vm403, %v387
      %405 = vst.msk [vmem:[%s179 + $0x4] sm:$0xf] %vm403, %v388
      %406 = vst.msk [vmem:[%s179 + $0x8] sm:$0xf] %vm403, %v389
      %407 = vst.msk [vmem:[%s179 + $0xc] sm:$0xf] %vm403, %v390
      %408 = vst.msk [vmem:[%s179 + $0x10] sm:$0xf] %vm403, %v391
      %409 = vst.msk [vmem:[%s179 + $0x14] sm:$0xf] %vm403, %v392
      %410 = vst.msk [vmem:[%s179 + $0x18] sm:$0xf] %vm403, %v393
      %411 = vst.msk [vmem:[%s179 + $0x1c] sm:$0xf] %vm403, %v394
      %s412 = smul.u32 8, %s15
      %p413 = scmp.lt.s32.totalorder %s412, 15
      %s414 = scalar_select %p413, %s412, 15
      %s415 = smul.addr %s414, 4
      %s416 = scalar_lea.vmem %s2, %s415
      %p417 = scmp.lt.s32.totalorder %s15, 1
      %s418 = scalar_select %p417, %s15, 1
      %s419 = smul.addr %s418, 8
      %s420 = scalar_lea.vmem %s3, %s419
      // Predicated region
      $region29: #{_forward.6} parent=27 // pred_check
        %p421 = pneg %p80
      $region30: #{_forward.6} parent=27 // pred_check_branch
        %423 = sbr.rel (%p421) target = $region32
      $region31: #{_forward.6} parent=27 // pred_region
        %s424 = smul.u32 8, %s15
      $region32: #{_forward.6} parent=27 // pred_fallthru
        _
      // Predicated region
      $region33: #{_forward.6} parent=27 // pred_check
        %p425 = pneg %p106
      $region34: #{_forward.6} parent=27 // pred_check_branch
        %427 = sbr.rel (%p425) target = $region36
      $region35: #{_forward.6} parent=27 // pred_region
        _
      $region36: #{_forward.6} parent=27 // pred_fallthru
        _
    $region28: #{_forward.6} parent=5 // pred_fallthru
      _
    %p428 = scmp.le.s32.totalorder 2, %s10
    // Predicated region
    $region37: #{_forward.6} parent=5 // pred_check
      %p429 = pneg %p428
    $region38: #{_forward.6} parent=5 // pred_check_branch
      %431 = sbr.rel (%p429) target = $region40
    $region39: #{_forward.6} parent=5 // pred_region
      %s432 = ssub.s32 %s10, 2
      // Predicated region
      $region41: #{_forward.6} parent=39 // pred_check
        %p433 = pneg %p86
      $region42: #{_forward.6} parent=39 // pred_check_branch
        %435 = sbr.rel (%p433) target = $region44
      $region43: #{_forward.6} parent=39 // pred_region
        %s436 = smul.u32 8, %s16
        %p437 = scmp.lt.s32.totalorder %s436, 15
        %s438 = scalar_select %p437, %s436, 15
        %s439 = smul.addr %s438, 4
        %s440 = scalar_lea.vmem %s2, %s439
      $region44: #{_forward.6} parent=39 // pred_fallthru
        _
      // Predicated region
      $region45: #{_forward.6} parent=39 // pred_check
        %p441 = pneg %p112
      $region46: #{_forward.6} parent=39 // pred_check_branch
        %443 = sbr.rel (%p441) target = $region48
      $region47: #{_forward.6} parent=39 // pred_region
        %p444 = scmp.lt.s32.totalorder %s16, 1
        %s445 = scalar_select %p444, %s16, 1
        %s446 = smul.addr %s445, 8
        %s447 = scalar_lea.vmem %s3, %s446
      $region48: #{_forward.6} parent=39 // pred_fallthru
        _
    $region40: #{_forward.6} parent=5 // pred_fallthru
      _
  $region6: #{_forward.6} parent=0 // loop_footer
    %s14 = sadd.s32 1, %s10
  $region7: #{_forward.6} parent=0 // loop_footer_branch
    %9 = sbr.rel target = $region3
  $region8: #{_forward.6} parent=0 // loop_exit
    _

// kernel: _forward.8
$region0: #{_forward.8}
  #allocation0 [shape = 'u32[]', space=smem, size = 0x4, offset = 0x4, fixed_abs, tag = 'smem constant byte address 0x4 - core index']
  #allocation1 [shape = 'u32[144,128]{1,0:T(1,128)}', space=vmem, size = 0x12000, scoped, tag = 'internal scratch']
  %s0 = inlined_call_operand.vmem [shape: bf16[128,288], index: 0, kind: input, shape index: {}]
  %s1 = inlined_call_operand.vmem [shape: bf16[288,32], index: 1, kind: input, shape index: {}]
  %s2 = inlined_call_operand.vmem [shape: bf16[128,32], index: 2, kind: output, shape index: {0}]
  %s3 = inlined_call_operand.vmem [shape: f32[16,32], index: 3, kind: output, shape index: {1}]
  %4 = xla_tuple %s2, %s3
  %s5 = sld [smem:[#allocation0]]
  $region49: #{_forward.8} parent=0
    _
  %s7 = ssub.s32 1, %s5
  %s8 = scalar_select 0, %s7, %s5
  loop: start=0, step=1, limit=4
  $region2: #{_forward.8} parent=0 // loop_pre_header
    _
  $region3: #{_forward.8} parent=0 // loop_header
    %s10 = sphi 0, %s14
    %p11 = scmp.ge.s32.totalorder %s10, 4
    %s20 = sphi 0, %s22
    %s23 = sphi 0, %s20
    %s24 = sphi 0, %s23
    %s40 = sphi 0, %s24
    %s44 = sphi 0, %s44
    %s46 = sphi 0, %s44
    %s47 = sphi 0, %s46
    %s61 = sphi 0, %s47
    %s67 = sphi 0, %s69
    %s70 = sphi 0, %s67
    %s71 = sphi 0, %s70
    %s87 = sphi 0, %s71
    %s93 = sphi 0, %s95
    %s96 = sphi 0, %s93
    %s97 = sphi 0, %s96
    %s113 = sphi 0, %s97
  $region4: #{_forward.8} parent=0 // loop_header_branch
    %13 = sbr.rel (%p11) target = $region8
  $region5: #{_forward.8} parent=0 // loop_body
    %s15 = ssub.s32 %s10, 1
    %s16 = ssub.s32 %s10, 2
    %s17 = sadd.s32 %s10, 1
    %s18 = ssub.s32 %s10, %s17
    %p19 = scmp.eq.s32.totalorder %s18, 0
    %s21 = sadd.s32 %s20, 1
    %s22 = scalar_select %p19, %s20, %s21
    %p25 = pneg %p19
    %p26 = scmp.eq.s32.totalorder %s10, 1
    %p27 = por %p25, %p26
    %p28 = scmp.ne.s32.totalorder %s20, %s23
    %p29 = scmp.eq.s32.totalorder %s10, 0
    %p30 = por %p28, %p29
    %p31 = scmp.ne.s32.totalorder %s20, %s23
    %p32 = scmp.eq.s32.totalorder %s15, 1
    %p33 = por %p31, %p32
    %p34 = scmp.ne.s32.totalorder %s23, %s24
    %p35 = scmp.eq.s32.totalorder %s15, 0
    %p36 = por %p34, %p35
    %p37 = scmp.ne.s32.totalorder %s23, %s24
    %p38 = scmp.eq.s32.totalorder %s16, 1
    %p39 = por %p37, %p38
    %p41 = scmp.ne.s32.totalorder %s24, %s40
    %p42 = scmp.eq.s32.totalorder %s16, 0
    %p43 = por %p41, %p42
    %s45 = sadd.s32 %s44, 1
    %p48 = scmp.eq.s32.totalorder %s10, 1
    %p49 = scmp.ne.s32.totalorder %s44, %s46
    %p50 = scmp.eq.s32.totalorder %s10, 0
    %p51 = por %p49, %p50
    %p52 = scmp.ne.s32.totalorder %s44, %s46
    %p53 = scmp.eq.s32.totalorder %s15, 1
    %p54 = por %p52, %p53
    %p55 = scmp.ne.s32.totalorder %s46, %s47
    %p56 = scmp.eq.s32.totalorder %s15, 0
    %p57 = por %p55, %p56
    %p58 = scmp.ne.s32.totalorder %s46, %s47
    %p59 = scmp.eq.s32.totalorder %s16, 1
    %p60 = por %p58, %p59
    %p62 = scmp.ne.s32.totalorder %s47, %s61
    %p63 = scmp.eq.s32.totalorder %s16, 0
    %p64 = por %p62, %p63
    %s65 = ssub.s32 %s10, %s17
    %p66 = scmp.eq.s32.totalorder %s65, 0
    %s68 = sadd.s32 %s67, 1
    %s69 = scalar_select %p66, %s67, %s68
    %p72 = pneg %p66
    %p73 = scmp.eq.s32.totalorder %s10, 1
    %p74 = por %p72, %p73
    %p75 = scmp.ne.s32.totalorder %s67, %s70
    %p76 = scmp.eq.s32.totalorder %s10, 0
    %p77 = por %p75, %p76
    %p78 = scmp.ne.s32.totalorder %s67, %s70
    %p79 = scmp.eq.s32.totalorder %s15, 1
    %p80 = por %p78, %p79
    %p81 = scmp.ne.s32.totalorder %s70, %s71
    %p82 = scmp.eq.s32.totalorder %s15, 0
    %p83 = por %p81, %p82
    %p84 = scmp.ne.s32.totalorder %s70, %s71
    %p85 = scmp.eq.s32.totalorder %s16, 1
    %p86 = por %p84, %p85
    %p88 = scmp.ne.s32.totalorder %s71, %s87
    %p89 = scmp.eq.s32.totalorder %s16, 0
    %p90 = por %p88, %p89
    %s91 = ssub.s32 %s10, %s17
    %p92 = scmp.eq.s32.totalorder %s91, 0
    %s94 = sadd.s32 %s93, 1
    %s95 = scalar_select %p92, %s93, %s94
    %p98 = pneg %p92
    %p99 = scmp.eq.s32.totalorder %s10, 1
    %p100 = por %p98, %p99
    %p101 = scmp.ne.s32.totalorder %s93, %s96
    %p102 = scmp.eq.s32.totalorder %s10, 0
    %p103 = por %p101, %p102
    %p104 = scmp.ne.s32.totalorder %s93, %s96
    %p105 = scmp.eq.s32.totalorder %s15, 1
    %p106 = por %p104, %p105
    %p107 = scmp.ne.s32.totalorder %s96, %s97
    %p108 = scmp.eq.s32.totalorder %s15, 0
    %p109 = por %p107, %p108
    %p110 = scmp.ne.s32.totalorder %s96, %s97
    %p111 = scmp.eq.s32.totalorder %s16, 1
    %p112 = por %p110, %p111
    %p114 = scmp.ne.s32.totalorder %s97, %s113
    %p115 = scmp.eq.s32.totalorder %s16, 0
    %p116 = por %p114, %p115
    %p117 = scmp.le.s32.totalorder 1, %s10
    %p118 = scmp.lt.s32.totalorder %s10, 3
    %p119 = pnand %p117, %p118
    %p120 = pneg %p119
    // Predicated region
    $region9: #{_forward.8} parent=5 // pred_check
      _
    $region10: #{_forward.8} parent=5 // pred_check_branch
      %122 = sbr.rel (%p119) target = $region12
    $region11: #{_forward.8} parent=5 // pred_region
      %s123 = ssub.s32 %s10, 1
      // Predicated region
      $region13: #{_forward.8} parent=11 // pred_check
        %p124 = pneg %p57
      $region14: #{_forward.8} parent=11 // pred_check_branch
        %126 = sbr.rel (%p124) target = $region16
      $region15: #{_forward.8} parent=11 // pred_region
        _
      $region16: #{_forward.8} parent=11 // pred_fallthru
        _
    $region12: #{_forward.8} parent=5 // pred_fallthru
      _
    %p127 = scmp.lt.s32.totalorder %s10, 2
    // Predicated region
    $region17: #{_forward.8} parent=5 // pred_check
      %p128 = pneg %p127
    $region18: #{_forward.8} parent=5 // pred_check_branch
      %130 = sbr.rel (%p128) target = $region20
    $region19: #{_forward.8} parent=5 // pred_region
      // Predicated region
      $region21: #{_forward.8} parent=19 // pred_check
        %p131 = pneg %p30
      $region22: #{_forward.8} parent=19 // pred_check_branch
        %133 = sbr.rel (%p131) target = $region24
      $region23: #{_forward.8} parent=19 // pred_region
        %s134 = smul.u32 8, %s10
        %p135 = scmp.lt.s32.totalorder %s134, 15
        %s136 = scalar_select %p135, %s134, 15
        %s137 = smul.addr %s136, 3
        %s138 = smul.addr %s137, 4
        %s139 = scalar_lea.vmem %s0, %s138
        %s140 = smul.u32 8, %s10
      $region24: #{_forward.8} parent=19 // pred_fallthru
        _
    $region20: #{_forward.8} parent=5 // pred_fallthru
      _
    %p141 = scmp.le.s32.totalorder 1, %s10
    %p142 = scmp.lt.s32.totalorder %s10, 3
    %p143 = pnand %p141, %p142
    %p144 = pneg %p143
    // Predicated region
    $region25: #{_forward.8} parent=5 // pred_check
      _
    $region26: #{_forward.8} parent=5 // pred_check_branch
      %146 = sbr.rel (%p143) target = $region28
    $region27: #{_forward.8} parent=5 // pred_region
      %s147 = ssub.s32 %s10, 1
      %s148 = smul.u32 8, %s15
      %p149 = scmp.lt.s32.totalorder %s148, 15
      %s150 = scalar_select %p149, %s148, 15
      %s151 = smul.addr %s150, 3
      %s152 = smul.addr %s151, 4
      %s153 = scalar_lea.vmem %s0, %s152
      %p154 = pneg %p36
      %p155 = pneg %p33
      %p156 = pneg %p57
      %p157 = pneg %p54
      %p158 = pneg %p83
      %p159 = pneg %p80
      %s160 = smul.u32 8, %s15
      %p161 = scmp.lt.s32.totalorder %s160, 15
      %s162 = scalar_select %p161, %s160, 15
      %s163 = smul.addr %s162, 4
      %s164 = scalar_lea.vmem %s2, %s163
      %p165 = pneg %p109
      %p166 = pneg %p106
      %p167 = scmp.lt.s32.totalorder %s15, 1
      %s168 = scalar_select %p167, %s15, 1
      %s169 = smul.addr %s168, 8
      %s170 = scalar_lea.vmem %s3, %s169
      %s171 = smul.u32 8, %s15
      %p172 = scmp.lt.s32.totalorder %s171, 15
      %s173 = scalar_select %p172, %s171, 15
      %s174 = smul.addr %s173, 3
      %s175 = smul.addr %s174, 4
      %s176 = scalar_lea.vmem %s0, %s175
      %s177 = smul.u32 8, %s15
      %s178 = smul.u32 8, %s15
      %p179 = scmp.lt.s32.totalorder %s178, 15
      %s180 = scalar_select %p179, %s178, 15
      %s181 = smul.addr %s180, 4
      %s182 = scalar_lea.vmem %s2, %s181
      %s183 = smul.u32 8, %s15
      %p184 = scmp.lt.s32.totalorder %s15, 1
      %s185 = scalar_select %p184, %s15, 1
      %s186 = smul.addr %s185, 8
      %s187 = scalar_lea.vmem %s3, %s186
      %v189 = vld [vmem:[%s176] sm:$0xff]
      %v190 = vld [vmem:[%s176 + $0x8] sm:$0xf]
      %v191 = vld [vmem:[%s176 + $0xc] sm:$0xff]
      %v192 = vld [vmem:[%s176 + $0x14] sm:$0xf]
      %v193 = vld [vmem:[%s176 + $0x18] sm:$0xff]
      %v194 = vld [vmem:[%s176 + $0x20] sm:$0xf]
      %v195 = vld [vmem:[%s176 + $0x24] sm:$0xff]
      %v196 = vld [vmem:[%s176 + $0x2c] sm:$0xf]
      %v197 = vld [vmem:[%s176 + $0x30] sm:$0xff]
      %v198 = vld [vmem:[%s176 + $0x38] sm:$0xf]
      %v199 = vld [vmem:[%s176 + $0x3c] sm:$0xff]
      %v200 = vld [vmem:[%s176 + $0x44] sm:$0xf]
      %v201 = vld [vmem:[%s176 + $0x48] sm:$0xff]
      %v202 = vld [vmem:[%s176 + $0x50] sm:$0xf]
      %v203 = vld [vmem:[%s176 + $0x54] sm:$0xff]
      %v204 = vld [vmem:[%s176 + $0x5c] sm:$0xf]
      %v205 = vld [vmem:[%s1] sm:$0xf]
      %v206 = vld [vmem:[%s1 + $0x4] sm:$0xf]
      %v207 = vld [vmem:[%s1 + $0x8] sm:$0xf]
      %v208 = vld [vmem:[%s1 + $0xc] sm:$0xf]
      %v209 = vld [vmem:[%s1 + $0x10] sm:$0xf]
      %v210 = vld [vmem:[%s1 + $0x14] sm:$0xf]
      %v211 = vld [vmem:[%s1 + $0x18] sm:$0xf]
      %v212 = vld [vmem:[%s1 + $0x1c] sm:$0xf]
      %v213 = vld [vmem:[%s1 + $0x20] sm:$0xf]
      %v214 = vld [vmem:[%s1 + $0x24] sm:$0xf]
      %v215 = vld [vmem:[%s1 + $0x28] sm:$0xf]
      %v216 = vld [vmem:[%s1 + $0x2c] sm:$0xf]
      %v217 = vld [vmem:[%s1 + $0x30] sm:$0xf]
      %v218 = vld [vmem:[%s1 + $0x34] sm:$0xf]
      %v219 = vld [vmem:[%s1 + $0x38] sm:$0xf]
      %v220 = vld [vmem:[%s1 + $0x3c] sm:$0xf]
      %v221 = vld [vmem:[%s1 + $0x40] sm:$0xf]
      %v222 = vld [vmem:[%s1 + $0x44] sm:$0xf]
      %v223 = vld [vmem:[%s1 + $0x48] sm:$0xf]
      %v224 = vld [vmem:[%s1 + $0x4c] sm:$0xf]
      %v225 = vld [vmem:[%s1 + $0x50] sm:$0xf]
      %v226 = vld [vmem:[%s1 + $0x54] sm:$0xf]
      %v227 = vld [vmem:[%s1 + $0x58] sm:$0xf]
      %v228 = vld [vmem:[%s1 + $0x5c] sm:$0xf]
      %v229 = vld [vmem:[%s1 + $0x60] sm:$0xf]
      %v230 = vld [vmem:[%s1 + $0x64] sm:$0xf]
      %v231 = vld [vmem:[%s1 + $0x68] sm:$0xf]
      %v232 = vld [vmem:[%s1 + $0x6c] sm:$0xf]
      %v233 = vld [vmem:[%s1 + $0x70] sm:$0xf]
      %v234 = vld [vmem:[%s1 + $0x74] sm:$0xf]
      %v235 = vld [vmem:[%s1 + $0x78] sm:$0xf]
      %v236 = vld [vmem:[%s1 + $0x7c] sm:$0xf]
      %v237 = vld [vmem:[%s1 + $0x80] sm:$0xf]
      %v238 = vld [vmem:[%s1 + $0x84] sm:$0xf]
      %v239 = vld [vmem:[%s1 + $0x88] sm:$0xf]
      %v240 = vld [vmem:[%s1 + $0x8c] sm:$0xf]
      %v257 = vunpack.c.l.b16 %v189
      %v258 = vunpack.c.h.b16 %v189
      %v259 = vunpack.c.l.b16 %v190
      %v260 = vunpack.c.l.b16 %v191
      %v261 = vunpack.c.h.b16 %v191
      %v262 = vunpack.c.l.b16 %v192
      %v263 = vunpack.c.l.b16 %v193
      %v264 = vunpack.c.h.b16 %v193
      %v265 = vunpack.c.l.b16 %v194
      %v266 = vunpack.c.l.b16 %v195
      %v267 = vunpack.c.h.b16 %v195
      %v268 = vunpack.c.l.b16 %v196
      %v269 = vunpack.c.l.b16 %v197
      %v270 = vunpack.c.h.b16 %v197
      %v271 = vunpack.c.l.b16 %v198
      %v272 = vunpack.c.l.b16 %v199
      %v273 = vunpack.c.h.b16 %v199
      %v274 = vunpack.c.l.b16 %v200
      %v275 = vunpack.c.l.b16 %v201
      %v276 = vunpack.c.h.b16 %v201
      %v277 = vunpack.c.l.b16 %v202
      %v278 = vunpack.c.l.b16 %v203
      %v279 = vunpack.c.h.b16 %v203
      %v280 = vunpack.c.l.b16 %v204
      %v281 = vpack.c.b16 %v260, %v257
      %v282 = vpack.c.b16 %v261, %v258
      %v283 = vpack.c.b16 %v262, %v259
      %v284 = vpack.c.b16 %v266, %v263
      %v285 = vpack.c.b16 %v267, %v264
      %v286 = vpack.c.b16 %v268, %v265
      %v287 = vpack.c.b16 %v272, %v269
      %v288 = vpack.c.b16 %v273, %v270
      %v289 = vpack.c.b16 %v274, %v271
      %v290 = vpack.c.b16 %v278, %v275
      %v291 = vpack.c.b16 %v279, %v276
      %v292 = vpack.c.b16 %v280, %v277
      %v337 = vunpack.c.l.b16 %v205
      %v338 = vunpack.c.l.b16 %v206
      %v339 = vunpack.c.l.b16 %v207
      %v340 = vunpack.c.l.b16 %v208
      %v341 = vunpack.c.l.b16 %v209
      %v342 = vunpack.c.l.b16 %v210
      %v343 = vunpack.c.l.b16 %v211
      %v344 = vunpack.c.l.b16 %v212
      %v345 = vunpack.c.l.b16 %v213
      %v346 = vunpack.c.l.b16 %v214
      %v347 = vunpack.c.l.b16 %v215
      %v348 = vunpack.c.l.b16 %v216
      %v349 = vunpack.c.l.b16 %v217
      %v350 = vunpack.c.l.b16 %v218
      %v351 = vunpack.c.l.b16 %v219
      %v352 = vunpack.c.l.b16 %v220
      %v353 = vunpack.c.l.b16 %v221
      %v354 = vunpack.c.l.b16 %v222
      %v355 = vunpack.c.l.b16 %v223
      %v356 = vunpack.c.l.b16 %v224
      %v357 = vunpack.c.l.b16 %v225
      %v358 = vunpack.c.l.b16 %v226
      %v359 = vunpack.c.l.b16 %v227
      %v360 = vunpack.c.l.b16 %v228
      %v361 = vunpack.c.l.b16 %v229
      %v362 = vunpack.c.l.b16 %v230
      %v363 = vunpack.c.l.b16 %v231
      %v364 = vunpack.c.l.b16 %v232
      %v365 = vunpack.c.l.b16 %v233
      %v366 = vunpack.c.l.b16 %v234
      %v367 = vunpack.c.l.b16 %v235
      %v368 = vunpack.c.l.b16 %v236
      %v369 = vunpack.c.l.b16 %v237
      %v370 = vunpack.c.l.b16 %v238
      %v371 = vunpack.c.l.b16 %v239
      %v372 = vunpack.c.l.b16 %v240
      %v373 = vpack.c.b16 %v338, %v337
      %v374 = vpack.c.b16 %v340, %v339
      %v375 = vpack.c.b16 %v342, %v341
      %v376 = vpack.c.b16 %v344, %v343
      %v377 = vpack.c.b16 %v346, %v345
      %v378 = vpack.c.b16 %v348, %v347
      %v379 = vpack.c.b16 %v350, %v349
      %v380 = vpack.c.b16 %v352, %v351
      %v381 = vpack.c.b16 %v354, %v353
      %v382 = vpack.c.b16 %v356, %v355
      %v383 = vpack.c.b16 %v358, %v357
      %v384 = vpack.c.b16 %v360, %v359
      %v385 = vpack.c.b16 %v362, %v361
      %v386 = vpack.c.b16 %v364, %v363
      %v387 = vpack.c.b16 %v366, %v365
      %v388 = vpack.c.b16 %v368, %v367
      %v389 = vpack.c.b16 %v370, %v369
      %v390 = vpack.c.b16 %v372, %v371
      %vm409 = vcmask 261120
      %v411 = vsel %vm409, %v283, 0
      %v414 = vsel %vm409, %v286, 0
      %v417 = vsel %vm409, %v289, 0
      %v420 = vsel %vm409, %v292, 0
      %422 = vmatprep.subr.bf16.mxu0 0
      %423 = vmatpush1.bf16.msra.mxu0 %v373
      %424 = vmatprep.subr.bf16.mxu0 0
      %425 = vmatpush1.bf16.msra.mxu0 %v374
      %426 = vmatprep.subr.bf16.mxu0 0
      %427 = vmatpush1.bf16.msra.mxu0 %v375
      %428 = vmatprep.subr.bf16.mxu0 0
      %429 = vmatpush1.bf16.msra.mxu0 %v376
      %430 = vmatprep.subr.bf16.mxu0 0
      %431 = vmatpush1.bf16.msra.mxu0 %v377
      %432 = vmatprep.subr.bf16.mxu0 0
      %433 = vmatpush1.bf16.msra.mxu0 %v378
      %434 = vmatprep.subr.bf16.mxu0 0
      %435 = vmatpush1.bf16.msra.mxu0 %v379
      %436 = vmatprep.subr.bf16.mxu0 0
      %437 = vmatpush1.bf16.msra.mxu0 %v380
      %438 = vmatprep.subr.bf16.mxu0 0
      %439 = vmatpush1.bf16.msra.mxu0 %v381
      %440 = vmatprep.subr.bf16.mxu0 0
      %441 = vmatpush1.bf16.msra.mxu0 %v382
      %442 = vmatprep.subr.bf16.mxu0 0
      %443 = vmatpush1.bf16.msra.mxu0 %v383
      %444 = vmatprep.subr.bf16.mxu0 0
      %445 = vmatpush1.bf16.msra.mxu0 %v384
      %446 = vmatprep.subr.bf16.mxu0 0
      %447 = vmatpush1.bf16.msra.mxu0 %v385
      %448 = vmatprep.subr.bf16.mxu0 0
      %449 = vmatpush1.bf16.msra.mxu0 %v386
      %450 = vmatprep.subr.bf16.mxu0 0
      %451 = vmatpush1.bf16.msra.mxu0 %v387
      %452 = vmatprep.subr.bf16.mxu0 0
      %453 = vmatpush1.bf16.msra.mxu0 %v388
      %454 = vmatprep.mubr.bf16.mxu0 %v282
      %455 = vmatmul.mubr.bf16.gmra.mrb[0].mxu0 %v281
      %v456 = vpop.f32.mrb[0].mxu0
      %v457 = vadd.f32 0.0, %v456
      %v458 = vpop.f32.mrb[0].mxu0
      %v459 = vpop.f32.mrb[0].mxu0
      %v460 = vadd.f32 0.0, %v459
      %v461 = vpop.f32.mrb[0].mxu0
      %462 = vmatprep.mubr.bf16.mxu0 %v285
      %463 = vmatmul.mubr.bf16.gmra.mrb[0].mxu0 %v284
      %v464 = vpop.f32.mrb[0].mxu0
      %v465 = vadd.f32 0.0, %v464
      %v466 = vpop.f32.mrb[0].mxu0
      %v467 = vpop.f32.mrb[0].mxu0
      %v468 = vadd.f32 0.0, %v467
      %v469 = vpop.f32.mrb[0].mxu0
      %470 = vmatprep.mubr.bf16.mxu0 %v288
      %471 = vmatmul.mubr.bf16.gmra.mrb[0].mxu0 %v287
      %v472 = vpop.f32.mrb[0].mxu0
      %v473 = vadd.f32 0.0, %v472
      %v474 = vpop.f32.mrb[0].mxu0
      %v475 = vpop.f32.mrb[0].mxu0
      %v476 = vadd.f32 0.0, %v475
      %v477 = vpop.f32.mrb[0].mxu0
      %478 = vmatprep.mubr.bf16.mxu0 %v291
      %479 = vmatmul.mubr.bf16.gmra.mrb[0].mxu0 %v290
      %v480 = vpop.f32.mrb[0].mxu0
      %v481 = vadd.f32 0.0, %v480
      %v482 = vpop.f32.mrb[0].mxu0
      %v483 = vpop.f32.mrb[0].mxu0
      %v484 = vadd.f32 0.0, %v483
      %v485 = vpop.f32.mrb[0].mxu0
      %486 = vdwg.mxu0
      %487 = vmatprep.subr.bf16.mxu0 0
      %488 = vmatpush1.bf16.msra.mxu0 %v389
      %489 = vmatprep.subr.bf16.mxu0 0
      %490 = vmatpush1.bf16.msra.mxu0 %v390
      %491 = vmatprep.subr.bf16.mxu0 0
      %492 = vmatpush1.bf16.msra.mxu0 0
      %493 = vmatprep.subr.bf16.mxu0 0
      %494 = vmatpush1.bf16.msra.mxu0 0
      %495 = vmatprep.subr.bf16.mxu0 0
      %496 = vmatpush1.bf16.msra.mxu0 0
      %497 = vmatprep.subr.bf16.mxu0 0
      %498 = vmatpush1.bf16.msra.mxu0 0
      %499 = vmatprep.subr.bf16.mxu0 0
      %500 = vmatpush1.bf16.msra.mxu0 0
      %501 = vmatprep.subr.bf16.mxu0 0
      %502 = vmatpush1.bf16.msra.mxu0 0
      %503 = vmatprep.subr.bf16.mxu0 0
      %504 = vmatpush1.bf16.msra.mxu0 0
      %505 = vmatprep.subr.bf16.mxu0 0
      %506 = vmatpush1.bf16.msra.mxu0 0
      %507 = vmatprep.subr.bf16.mxu0 0
      %508 = vmatpush1.bf16.msra.mxu0 0
      %509 = vmatprep.subr.bf16.mxu0 0
      %510 = vmatpush1.bf16.msra.mxu0 0
      %511 = vmatprep.subr.bf16.mxu0 0
      %512 = vmatpush1.bf16.msra.mxu0 0
      %513 = vmatprep.subr.bf16.mxu0 0
      %514 = vmatpush1.bf16.msra.mxu0 0
      %515 = vmatprep.subr.bf16.mxu0 0
      %516 = vmatpush1.bf16.msra.mxu0 0
      %517 = vmatprep.subr.bf16.mxu0 0
      %518 = vmatpush1.bf16.msra.mxu0 0
      %519 = vmatprep.mubr.bf16.mxu0 0
      %520 = vmatmul.mubr.bf16.gmra.mrb[0].mxu0 %v411
      %v521 = vpop.f32.mrb[0].mxu0
      %v522 = vadd.f32 %v457, %v521
      %v523 = vpop.f32.mrb[0].mxu0
      %v524 = vpop.f32.mrb[0].mxu0
      %v525 = vadd.f32 %v460, %v524
      %v526 = vpop.f32.mrb[0].mxu0
      %527 = vmatprep.mubr.bf16.mxu0 0
      %528 = vmatmul.mubr.bf16.gmra.mrb[0].mxu0 %v414
      %v529 = vpop.f32.mrb[0].mxu0
      %v530 = vadd.f32 %v465, %v529
      %v531 = vpop.f32.mrb[0].mxu0
      %v532 = vpop.f32.mrb[0].mxu0
      %v533 = vadd.f32 %v468, %v532
      %v534 = vpop.f32.mrb[0].mxu0
      %535 = vmatprep.mubr.bf16.mxu0 0
      %536 = vmatmul.mubr.bf16.gmra.mrb[0].mxu0 %v417
      %v537 = vpop.f32.mrb[0].mxu0
      %v538 = vadd.f32 %v473, %v537
      %v539 = vpop.f32.mrb[0].mxu0
      %v540 = vpop.f32.mrb[0].mxu0
      %v541 = vadd.f32 %v476, %v540
      %v542 = vpop.f32.mrb[0].mxu0
      %543 = vmatprep.mubr.bf16.mxu0 0
      %544 = vmatmul.mubr.bf16.gmra.mrb[0].mxu0 %v420
      %v545 = vpop.f32.mrb[0].mxu0
      %v546 = vadd.f32 %v481, %v545
      %v547 = vpop.f32.mrb[0].mxu0
      %v548 = vpop.f32.mrb[0].mxu0
      %v549 = vadd.f32 %v484, %v548
      %v550 = vpop.f32.mrb[0].mxu0
      %551 = vdwg.mxu0
      %552 = vst.msk [vmem:[%s187] sm:$0xff] %vm409, 0.0
      %v553 = vsel %vm409, %v522, 0.0
      %v554 = vsel %vm409, %v525, 0.0
      %v555 = vadd.f32 %v553, %v554
      %v556 = vsel %vm409, %v530, 0.0
      %v557 = vadd.f32 %v555, %v556
      %v558 = vsel %vm409, %v533, 0.0
      %v559 = vadd.f32 %v557, %v558
      %v560 = vsel %vm409, %v538, 0.0
      %v561 = vadd.f32 %v559, %v560
      %v562 = vsel %vm409, %v541, 0.0
      %v563 = vadd.f32 %v561, %v562
      %v564 = vsel %vm409, %v546, 0.0
      %v565 = vadd.f32 %v563, %v564
      %v566 = vsel %vm409, %v549, 0.0
      %v567 = vadd.f32 %v565, %v566
      %v568 = vrot.slane %v567, 4
      %v569 = vadd.f32 %v567, %v568
      %v570 = vrot.slane %v569, 2
      %v571 = vadd.f32 %v569, %v570
      %v572 = vrot.slane %v571, 1
      %v573 = vadd.f32 %v571, %v572
      %vm574 = vcmask 253952
      %575 = vst.msk [vmem:[%s187] sm:$0x1] %vm574, %v573
      %v576 = vmul.f32 %v522, %v522
      %v577 = vmul.f32 %v525, %v525
      %v578 = vmul.f32 %v530, %v530
      %v579 = vmul.f32 %v533, %v533
      %v580 = vmul.f32 %v538, %v538
      %v581 = vmul.f32 %v541, %v541
      %v582 = vmul.f32 %v546, %v546
      %v583 = vmul.f32 %v549, %v549
      %v584 = vsel %vm409, %v576, 0.0
      %v585 = vsel %vm409, %v577, 0.0
      %v586 = vadd.f32 %v584, %v585
      %v587 = vsel %vm409, %v578, 0.0
      %v588 = vadd.f32 %v586, %v587
      %v589 = vsel %vm409, %v579, 0.0
      %v590 = vadd.f32 %v588, %v589
      %v591 = vsel %vm409, %v580, 0.0
      %v592 = vadd.f32 %v590, %v591
      %v593 = vsel %vm409, %v581, 0.0
      %v594 = vadd.f32 %v592, %v593
      %v595 = vsel %vm409, %v582, 0.0
      %v596 = vadd.f32 %v594, %v595
      %v597 = vsel %vm409, %v583, 0.0
      %v598 = vadd.f32 %v596, %v597
      %v599 = vrot.slane %v598, 4
      %v600 = vadd.f32 %v598, %v599
      %v601 = vrot.slane %v600, 2
      %v602 = vadd.f32 %v600, %v601
      %v603 = vrot.slane %v602, 1
      %v604 = vadd.f32 %v602, %v603
      %605 = vst.msk [vmem:[%s187 + $0x1] sm:$0x1] %vm574, %v604
      %v606 = vpack.c.bf16 %v525, %v522
      %v607 = vpack.c.bf16 %v533, %v530
      %v608 = vpack.c.bf16 %v541, %v538
      %v609 = vpack.c.bf16 %v549, %v546
      %v614 = vunpack.c.l.b16 %v606
      %v615 = vunpack.c.h.b16 %v606
      %v616 = vunpack.c.l.b16 %v607
      %v617 = vunpack.c.h.b16 %v607
      %v618 = vunpack.c.l.b16 %v608
      %v619 = vunpack.c.h.b16 %v608
      %v620 = vunpack.c.l.b16 %v609
      %v621 = vunpack.c.h.b16 %v609
      %v622 = vpack.c.b16 %v614, %v614
      %v623 = vpack.c.b16 %v615, %v615
      %v624 = vpack.c.b16 %v616, %v616
      %v625 = vpack.c.b16 %v617, %v617
      %v626 = vpack.c.b16 %v618, %v618
      %v627 = vpack.c.b16 %v619, %v619
      %v628 = vpack.c.b16 %v620, %v620
      %v629 = vpack.c.b16 %v621, %v621
      %vm638 = vcmask 257024
      %639 = vst.msk [vmem:[%s182] sm:$0xf] %vm638, %v622
      %640 = vst.msk [vmem:[%s182 + $0x4] sm:$0xf] %vm638, %v623
      %641 = vst.msk [vmem:[%s182 + $0x8] sm:$0xf] %vm638, %v624
      %642 = vst.msk [vmem:[%s182 + $0xc] sm:$0xf] %vm638, %v625
      %643 = vst.msk [vmem:[%s182 + $0x10] sm:$0xf] %vm638, %v626
      %644 = vst.msk [vmem:[%s182 + $0x14] sm:$0xf] %vm638, %v627
      %645 = vst.msk [vmem:[%s182 + $0x18] sm:$0xf] %vm638, %v628
      %646 = vst.msk [vmem:[%s182 + $0x1c] sm:$0xf] %vm638, %v629
      %s647 = smul.u32 8, %s15
      %p648 = scmp.lt.s32.totalorder %s647, 15
      %s649 = scalar_select %p648, %s647, 15
      %s650 = smul.addr %s649, 4
      %s651 = scalar_lea.vmem %s2, %s650
      %p652 = scmp.lt.s32.totalorder %s15, 1
      %s653 = scalar_select %p652, %s15, 1
      %s654 = smul.addr %s653, 8
      %s655 = scalar_lea.vmem %s3, %s654
      // Predicated region
      $region29: #{_forward.8} parent=27 // pred_check
        %p656 = pneg %p80
      $region30: #{_forward.8} parent=27 // pred_check_branch
        %658 = sbr.rel (%p656) target = $region32
      $region31: #{_forward.8} parent=27 // pred_region
        %s659 = smul.u32 8, %s15
      $region32: #{_forward.8} parent=27 // pred_fallthru
        _
      // Predicated region
      $region33: #{_forward.8} parent=27 // pred_check
        %p660 = pneg %p106
      $region34: #{_forward.8} parent=27 // pred_check_branch
        %662 = sbr.rel (%p660) target = $region36
      $region35: #{_forward.8} parent=27 // pred_region
        _
      $region36: #{_forward.8} parent=27 // pred_fallthru
        _
    $region28: #{_forward.8} parent=5 // pred_fallthru
      _
    %p663 = scmp.le.s32.totalorder 2, %s10
    // Predicated region
    $region37: #{_forward.8} parent=5 // pred_check
      %p664 = pneg %p663
    $region38: #{_forward.8} parent=5 // pred_check_branch
      %666 = sbr.rel (%p664) target = $region40
    $region39: #{_forward.8} parent=5 // pred_region
      %s667 = ssub.s32 %s10, 2
      // Predicated region
      $region41: #{_forward.8} parent=39 // pred_check
        %p668 = pneg %p86
      $region42: #{_forward.8} parent=39 // pred_check_branch
        %670 = sbr.rel (%p668) target = $region44
      $region43: #{_forward.8} parent=39 // pred_region
        %s671 = smul.u32 8, %s16
        %p672 = scmp.lt.s32.totalorder %s671, 15
        %s673 = scalar_select %p672, %s671, 15
        %s674 = smul.addr %s673, 4
        %s675 = scalar_lea.vmem %s2, %s674
      $region44: #{_forward.8} parent=39 // pred_fallthru
        _
      // Predicated region
      $region45: #{_forward.8} parent=39 // pred_check
        %p676 = pneg %p112
      $region46: #{_forward.8} parent=39 // pred_check_branch
        %678 = sbr.rel (%p676) target = $region48
      $region47: #{_forward.8} parent=39 // pred_region
        %p679 = scmp.lt.s32.totalorder %s16, 1
        %s680 = scalar_select %p679, %s16, 1
        %s681 = smul.addr %s680, 8
        %s682 = scalar_lea.vmem %s3, %s681
      $region48: #{_forward.8} parent=39 // pred_fallthru
        _
    $region40: #{_forward.8} parent=5 // pred_fallthru
      _
  $region6: #{_forward.8} parent=0 // loop_footer
    %s14 = sadd.s32 1, %s10
  $region7: #{_forward.8} parent=0 // loop_footer_branch
    %9 = sbr.rel target = $region3
  $region8: #{_forward.8} parent=0 // loop_exit
    _

// kernel: _forward.11
$region0: #{_forward.11}
  #allocation0 [shape = 'u32[]', space=smem, size = 0x4, offset = 0x4, fixed_abs, tag = 'smem constant byte address 0x4 - core index']
  #allocation1 [shape = 'u32[144,128]{1,0:T(1,128)}', space=vmem, size = 0x12000, scoped, tag = 'internal scratch']
  %s0 = inlined_call_operand.vmem [shape: bf16[32,64], index: 0, kind: input, shape index: {}]
  %s1 = inlined_call_operand.vmem [shape: f32[2,64], index: 1, kind: input, shape index: {}]
  %s2 = inlined_call_operand.hbm [shape: f32[32,64], index: 2, kind: output, shape index: {}]
  %s3 = sld [smem:[#allocation0]]
  $region41: #{_forward.11} parent=0
    _
  %s5 = ssub.s32 1, %s3
  %s6 = scalar_select 0, %s5, %s3
  $region1: #{_forward.11} parent=0
    #allocation2 [shape = 'u8[16384]{0}', space=vmem, size = 0x4000, scoped, tag = 'output window, operand 0']
    #allocation3 [shape = 's32[2]{0}', space=sflag, size = 0x8, scoped, tag = 'scoped memory for _forward.11']
    %7 = vsyncpa [#allocation3], 0
    %s8 = scalar_lea.sflag [#allocation3], 1
    %9 = vsyncpa %s8, 0
    loop: start=0, step=1, limit=4
    $region2: #{_forward.11} parent=1 // loop_pre_header
      _
    $region3: #{_forward.11} parent=1 // loop_header
      %s11 = sphi 0, %s15
      %p12 = scmp.ge.s32.totalorder %s11, 4
      %s21 = sphi 0, %s23
      %s24 = sphi 0, %s21
      %s25 = sphi 0, %s24
      %s41 = sphi 0, %s25
      %s45 = sphi 0, %s45
      %s47 = sphi 0, %s45
      %s48 = sphi 0, %s47
      %s62 = sphi 0, %s48
      %s68 = sphi 0, %s70
      %s71 = sphi 0, %s68
      %s72 = sphi 0, %s71
      %s88 = sphi 0, %s72
    $region4: #{_forward.11} parent=1 // loop_header_branch
      %14 = sbr.rel (%p12) target = $region8
    $region5: #{_forward.11} parent=1 // loop_body
      %s16 = ssub.s32 %s11, 1
      %s17 = ssub.s32 %s11, 2
      %s18 = sadd.s32 %s11, 1
      %s19 = ssub.s32 %s11, %s18
      %p20 = scmp.eq.s32.totalorder %s19, 0
      %s22 = sadd.s32 %s21, 1
      %s23 = scalar_select %p20, %s21, %s22
      %p26 = pneg %p20
      %p27 = scmp.eq.s32.totalorder %s11, 1
      %p28 = por %p26, %p27
      %p29 = scmp.ne.s32.totalorder %s21, %s24
      %p30 = scmp.eq.s32.totalorder %s11, 0
      %p31 = por %p29, %p30
      %p32 = scmp.ne.s32.totalorder %s21, %s24
      %p33 = scmp.eq.s32.totalorder %s16, 1
      %p34 = por %p32, %p33
      %p35 = scmp.ne.s32.totalorder %s24, %s25
      %p36 = scmp.eq.s32.totalorder %s16, 0
      %p37 = por %p35, %p36
      %p38 = scmp.ne.s32.totalorder %s24, %s25
      %p39 = scmp.eq.s32.totalorder %s17, 1
      %p40 = por %p38, %p39
      %p42 = scmp.ne.s32.totalorder %s25, %s41
      %p43 = scmp.eq.s32.totalorder %s17, 0
      %p44 = por %p42, %p43
      %s46 = sadd.s32 %s45, 1
      %p49 = scmp.eq.s32.totalorder %s11, 1
      %p50 = scmp.ne.s32.totalorder %s45, %s47
      %p51 = scmp.eq.s32.totalorder %s11, 0
      %p52 = por %p50, %p51
      %p53 = scmp.ne.s32.totalorder %s45, %s47
      %p54 = scmp.eq.s32.totalorder %s16, 1
      %p55 = por %p53, %p54
      %p56 = scmp.ne.s32.totalorder %s47, %s48
      %p57 = scmp.eq.s32.totalorder %s16, 0
      %p58 = por %p56, %p57
      %p59 = scmp.ne.s32.totalorder %s47, %s48
      %p60 = scmp.eq.s32.totalorder %s17, 1
      %p61 = por %p59, %p60
      %p63 = scmp.ne.s32.totalorder %s48, %s62
      %p64 = scmp.eq.s32.totalorder %s17, 0
      %p65 = por %p63, %p64
      %s66 = ssub.s32 %s11, %s18
      %p67 = scmp.eq.s32.totalorder %s66, 0
      %s69 = sadd.s32 %s68, 1
      %s70 = scalar_select %p67, %s68, %s69
      %p73 = pneg %p67
      %p74 = scmp.eq.s32.totalorder %s11, 1
      %p75 = por %p73, %p74
      %p76 = scmp.ne.s32.totalorder %s68, %s71
      %p77 = scmp.eq.s32.totalorder %s11, 0
      %p78 = por %p76, %p77
      %p79 = scmp.ne.s32.totalorder %s68, %s71
      %p80 = scmp.eq.s32.totalorder %s16, 1
      %p81 = por %p79, %p80
      %p82 = scmp.ne.s32.totalorder %s71, %s72
      %p83 = scmp.eq.s32.totalorder %s16, 0
      %p84 = por %p82, %p83
      %p85 = scmp.ne.s32.totalorder %s71, %s72
      %p86 = scmp.eq.s32.totalorder %s17, 1
      %p87 = por %p85, %p86
      %p89 = scmp.ne.s32.totalorder %s72, %s88
      %p90 = scmp.eq.s32.totalorder %s17, 0
      %p91 = por %p89, %p90
      %p92 = scmp.le.s32.totalorder 1, %s11
      %p93 = scmp.lt.s32.totalorder %s11, 3
      %p94 = pnand %p92, %p93
      %p95 = pneg %p94
      // Predicated region
      $region9: #{_forward.11} parent=5 // pred_check
        _
      $region10: #{_forward.11} parent=5 // pred_check_branch
        %97 = sbr.rel (%p94) target = $region12
      $region11: #{_forward.11} parent=5 // pred_region
        %s98 = ssub.s32 %s11, 1
        // Predicated region
        $region13: #{_forward.11} parent=11 // pred_check
          %p99 = pneg %p58
        $region14: #{_forward.11} parent=11 // pred_check_branch
          %101 = sbr.rel (%p99) target = $region16
        $region15: #{_forward.11} parent=11 // pred_region
          _
        $region16: #{_forward.11} parent=11 // pred_fallthru
          _
      $region12: #{_forward.11} parent=5 // pred_fallthru
        _
      %p102 = scmp.lt.s32.totalorder %s11, 2
      // Predicated region
      $region17: #{_forward.11} parent=5 // pred_check
        %p103 = pneg %p102
      $region18: #{_forward.11} parent=5 // pred_check_branch
        %105 = sbr.rel (%p103) target = $region20
      $region19: #{_forward.11} parent=5 // pred_region
        // Predicated region
        $region21: #{_forward.11} parent=19 // pred_check
          %p106 = pneg %p31
        $region22: #{_forward.11} parent=19 // pred_check_branch
          %108 = sbr.rel (%p106) target = $region24
        $region23: #{_forward.11} parent=19 // pred_region
          %s109 = smul.u32 2, %s11
          %p110 = scmp.lt.s32.totalorder %s109, 3
          %s111 = scalar_select %p110, %s109, 3
          %s112 = smul.addr %s111, 4
          %s113 = scalar_lea.vmem %s0, %s112
          %s114 = smul.u32 2, %s11
        $region24: #{_forward.11} parent=19 // pred_fallthru
          _
      $region20: #{_forward.11} parent=5 // pred_fallthru
        _
      %p115 = scmp.le.s32.totalorder 1, %s11
      %p116 = scmp.lt.s32.totalorder %s11, 3
      %p117 = pnand %p115, %p116
      %p118 = pneg %p117
      // Predicated region
      $region25: #{_forward.11} parent=5 // pred_check
        _
      $region26: #{_forward.11} parent=5 // pred_check_branch
        %120 = sbr.rel (%p117) target = $region28
      $region27: #{_forward.11} parent=5 // pred_region
        %s121 = ssub.s32 %s11, 1
        %s122 = smul.u32 2, %s16
        %p123 = scmp.lt.s32.totalorder %s122, 3
        %s124 = scalar_select %p123, %s122, 3
        %s125 = smul.addr %s124, 4
        %s126 = scalar_lea.vmem %s0, %s125
        %p127 = pneg %p37
        %p128 = pneg %p34
        %p129 = pneg %p58
        %p130 = pneg %p55
        %p131 = pneg %p84
        %p132 = pneg %p81
        %s133 = sand.u32 %s71, 1
        %s134 = scalar_lea.sflag [#allocation3], %s133
        %s135 = sand.u32 %s71, 1
        %s136 = smul.addr %s135, 16
        %s137 = scalar_lea.vmem [#allocation2], %s136
        %s138 = smul.u32 2, %s16
        %p139 = scmp.lt.s32.totalorder %s138, 3
        %s140 = scalar_select %p139, %s138, 3
        %s141 = smul.addr %s140, 4
        %s142 = scalar_lea.vmem %s0, %s141
        %s143 = smul.u32 2, %s16
        %s144 = smul.u32 2, %s16
        %v145 = vld [vmem:[%s142] sm:$0xf]
        %v146 = vld [vmem:[%s142 + $0x4] sm:$0xf]
        %v147 = vunpack.c.l.bf16 %v145
        %v148 = vunpack.c.l.bf16 %v146
        %v149 = vld [vmem:[%s1] sm:$0x1]
        %v150 = vlaneseq
        %v151 = vshrl.u32 %v150, 7
        %v152 = vsub.s32 0, %v151
        %v153 = vrot.slane %v149, %v152
        %v154 = vmul.f32 %v147, %v153
        %v155 = vmul.f32 %v148, %v153
        %v156 = vld [vmem:[%s1 + $0x1] sm:$0x1]
        %v157 = vlaneseq
        %v158 = vshrl.u32 %v157, 7
        %v159 = vsub.s32 0, %v158
        %v160 = vrot.slane %v156, %v159
        %v161 = vadd.f32 %v154, %v160
        %v162 = vadd.f32 %v155, %v160
        %v163 = vmax.f32 %v161, 0.0
        %v164 = vmax.f32 %v162, 0.0
        %vm165 = vcmask 523264
        %166 = vst.msk [vmem:[%s137] sm:$0xff] %vm165, %v163
        %167 = vst.msk [vmem:[%s137 + $0x8] sm:$0xff] %vm165, %v164
        %s168 = sand.u32 %s71, 1
        %s169 = scalar_lea.sflag [#allocation3], %s168
        %s170 = sand.u32 %s71, 1
        %s171 = smul.addr %s170, 16
        %s172 = scalar_lea.vmem [#allocation2], %s171
        // Predicated region
        $region29: #{_forward.11} parent=27 // pred_check
          %p173 = pneg %p81
        $region30: #{_forward.11} parent=27 // pred_check_branch
          %175 = sbr.rel (%p173) target = $region32
        $region31: #{_forward.11} parent=27 // pred_region
          %s176 = smul.u32 2, %s16
          %s178 = ssub.s32 256, 256
          %179 = vsyncadd %s169, %s178
          %s180 = smul.addr %s176, 128
          %s181 = scalar_lea.hbm %s2, %s180
          %s182 = sshll.u32 %s172, 4
          %s183 = int_to_ptr.vmem [resolvable:$true] %s182
          %188 = dma.vmem_to_hbm [thread:$0]  %s183, 256, %s181, %s169, 128, 128, 8
        $region32: #{_forward.11} parent=27 // pred_fallthru
          _
      $region28: #{_forward.11} parent=5 // pred_fallthru
        _
      %p189 = scmp.le.s32.totalorder 2, %s11
      // Predicated region
      $region33: #{_forward.11} parent=5 // pred_check
        %p190 = pneg %p189
      $region34: #{_forward.11} parent=5 // pred_check_branch
        %192 = sbr.rel (%p190) target = $region36
      $region35: #{_forward.11} parent=5 // pred_region
        %s193 = ssub.s32 %s11, 2
        // Predicated region
        $region37: #{_forward.11} parent=35 // pred_check
          %p194 = pneg %p87
        $region38: #{_forward.11} parent=35 // pred_check_branch
          %196 = sbr.rel (%p194) target = $region40
        $region39: #{_forward.11} parent=35 // pred_region
          %s197 = sand.u32 %s72, 1
          %s198 = scalar_lea.sflag [#allocation3], %s197
          %s199 = sand.u32 %s72, 1
          %s200 = smul.addr %s199, 16
          %s201 = scalar_lea.vmem [#allocation2], %s200
          %202 = dma.done %s198, 256
        $region40: #{_forward.11} parent=35 // pred_fallthru
          _
      $region36: #{_forward.11} parent=5 // pred_fallthru
        _
    $region6: #{_forward.11} parent=1 // loop_footer
      %s15 = sadd.s32 1, %s11
    $region7: #{_forward.11} parent=1 // loop_footer_branch
      %10 = sbr.rel target = $region3
    $region8: #{_forward.11} parent=1 // loop_exit
      _
    %203 = vsyncpa [#allocation3], 1
    %s204 = scalar_lea.sflag [#allocation3], 1
    %205 = vsyncpa %s204, 1

// kernel: _forward.10
$region0: #{_forward.10}
  #allocation0 [shape = 'u32[]', space=smem, size = 0x4, offset = 0x4, fixed_abs, tag = 'smem constant byte address 0x4 - core index']
  #allocation1 [shape = 'u32[144,128]{1,0:T(1,128)}', space=vmem, size = 0x12000, scoped, tag = 'internal scratch']
  %s0 = inlined_call_operand.vmem [shape: bf16[32,288], index: 0, kind: input, shape index: {}]
  %s1 = inlined_call_operand.vmem [shape: bf16[288,64], index: 1, kind: input, shape index: {}]
  %s2 = inlined_call_operand.vmem [shape: bf16[32,64], index: 2, kind: output, shape index: {0}]
  %s3 = inlined_call_operand.vmem [shape: f32[16,64], index: 3, kind: output, shape index: {1}]
  %4 = xla_tuple %s2, %s3
  %s5 = sld [smem:[#allocation0]]
  $region49: #{_forward.10} parent=0
    _
  %s7 = ssub.s32 1, %s5
  %s8 = scalar_select 0, %s7, %s5
  loop: start=0, step=1, limit=4
  $region2: #{_forward.10} parent=0 // loop_pre_header
    _
  $region3: #{_forward.10} parent=0 // loop_header
    %s10 = sphi 0, %s14
    %p11 = scmp.ge.s32.totalorder %s10, 4
    %s20 = sphi 0, %s22
    %s23 = sphi 0, %s20
    %s24 = sphi 0, %s23
    %s40 = sphi 0, %s24
    %s44 = sphi 0, %s44
    %s46 = sphi 0, %s44
    %s47 = sphi 0, %s46
    %s61 = sphi 0, %s47
    %s67 = sphi 0, %s69
    %s70 = sphi 0, %s67
    %s71 = sphi 0, %s70
    %s87 = sphi 0, %s71
    %s93 = sphi 0, %s95
    %s96 = sphi 0, %s93
    %s97 = sphi 0, %s96
    %s113 = sphi 0, %s97
  $region4: #{_forward.10} parent=0 // loop_header_branch
    %13 = sbr.rel (%p11) target = $region8
  $region5: #{_forward.10} parent=0 // loop_body
    %s15 = ssub.s32 %s10, 1
    %s16 = ssub.s32 %s10, 2
    %s17 = sadd.s32 %s10, 1
    %s18 = ssub.s32 %s10, %s17
    %p19 = scmp.eq.s32.totalorder %s18, 0
    %s21 = sadd.s32 %s20, 1
    %s22 = scalar_select %p19, %s20, %s21
    %p25 = pneg %p19
    %p26 = scmp.eq.s32.totalorder %s10, 1
    %p27 = por %p25, %p26
    %p28 = scmp.ne.s32.totalorder %s20, %s23
    %p29 = scmp.eq.s32.totalorder %s10, 0
    %p30 = por %p28, %p29
    %p31 = scmp.ne.s32.totalorder %s20, %s23
    %p32 = scmp.eq.s32.totalorder %s15, 1
    %p33 = por %p31, %p32
    %p34 = scmp.ne.s32.totalorder %s23, %s24
    %p35 = scmp.eq.s32.totalorder %s15, 0
    %p36 = por %p34, %p35
    %p37 = scmp.ne.s32.totalorder %s23, %s24
    %p38 = scmp.eq.s32.totalorder %s16, 1
    %p39 = por %p37, %p38
    %p41 = scmp.ne.s32.totalorder %s24, %s40
    %p42 = scmp.eq.s32.totalorder %s16, 0
    %p43 = por %p41, %p42
    %s45 = sadd.s32 %s44, 1
    %p48 = scmp.eq.s32.totalorder %s10, 1
    %p49 = scmp.ne.s32.totalorder %s44, %s46
    %p50 = scmp.eq.s32.totalorder %s10, 0
    %p51 = por %p49, %p50
    %p52 = scmp.ne.s32.totalorder %s44, %s46
    %p53 = scmp.eq.s32.totalorder %s15, 1
    %p54 = por %p52, %p53
    %p55 = scmp.ne.s32.totalorder %s46, %s47
    %p56 = scmp.eq.s32.totalorder %s15, 0
    %p57 = por %p55, %p56
    %p58 = scmp.ne.s32.totalorder %s46, %s47
    %p59 = scmp.eq.s32.totalorder %s16, 1
    %p60 = por %p58, %p59
    %p62 = scmp.ne.s32.totalorder %s47, %s61
    %p63 = scmp.eq.s32.totalorder %s16, 0
    %p64 = por %p62, %p63
    %s65 = ssub.s32 %s10, %s17
    %p66 = scmp.eq.s32.totalorder %s65, 0
    %s68 = sadd.s32 %s67, 1
    %s69 = scalar_select %p66, %s67, %s68
    %p72 = pneg %p66
    %p73 = scmp.eq.s32.totalorder %s10, 1
    %p74 = por %p72, %p73
    %p75 = scmp.ne.s32.totalorder %s67, %s70
    %p76 = scmp.eq.s32.totalorder %s10, 0
    %p77 = por %p75, %p76
    %p78 = scmp.ne.s32.totalorder %s67, %s70
    %p79 = scmp.eq.s32.totalorder %s15, 1
    %p80 = por %p78, %p79
    %p81 = scmp.ne.s32.totalorder %s70, %s71
    %p82 = scmp.eq.s32.totalorder %s15, 0
    %p83 = por %p81, %p82
    %p84 = scmp.ne.s32.totalorder %s70, %s71
    %p85 = scmp.eq.s32.totalorder %s16, 1
    %p86 = por %p84, %p85
    %p88 = scmp.ne.s32.totalorder %s71, %s87
    %p89 = scmp.eq.s32.totalorder %s16, 0
    %p90 = por %p88, %p89
    %s91 = ssub.s32 %s10, %s17
    %p92 = scmp.eq.s32.totalorder %s91, 0
    %s94 = sadd.s32 %s93, 1
    %s95 = scalar_select %p92, %s93, %s94
    %p98 = pneg %p92
    %p99 = scmp.eq.s32.totalorder %s10, 1
    %p100 = por %p98, %p99
    %p101 = scmp.ne.s32.totalorder %s93, %s96
    %p102 = scmp.eq.s32.totalorder %s10, 0
    %p103 = por %p101, %p102
    %p104 = scmp.ne.s32.totalorder %s93, %s96
    %p105 = scmp.eq.s32.totalorder %s15, 1
    %p106 = por %p104, %p105
    %p107 = scmp.ne.s32.totalorder %s96, %s97
    %p108 = scmp.eq.s32.totalorder %s15, 0
    %p109 = por %p107, %p108
    %p110 = scmp.ne.s32.totalorder %s96, %s97
    %p111 = scmp.eq.s32.totalorder %s16, 1
    %p112 = por %p110, %p111
    %p114 = scmp.ne.s32.totalorder %s97, %s113
    %p115 = scmp.eq.s32.totalorder %s16, 0
    %p116 = por %p114, %p115
    %p117 = scmp.le.s32.totalorder 1, %s10
    %p118 = scmp.lt.s32.totalorder %s10, 3
    %p119 = pnand %p117, %p118
    %p120 = pneg %p119
    // Predicated region
    $region9: #{_forward.10} parent=5 // pred_check
      _
    $region10: #{_forward.10} parent=5 // pred_check_branch
      %122 = sbr.rel (%p119) target = $region12
    $region11: #{_forward.10} parent=5 // pred_region
      %s123 = ssub.s32 %s10, 1
      // Predicated region
      $region13: #{_forward.10} parent=11 // pred_check
        %p124 = pneg %p57
      $region14: #{_forward.10} parent=11 // pred_check_branch
        %126 = sbr.rel (%p124) target = $region16
      $region15: #{_forward.10} parent=11 // pred_region
        _
      $region16: #{_forward.10} parent=11 // pred_fallthru
        _
    $region12: #{_forward.10} parent=5 // pred_fallthru
      _
    %p127 = scmp.lt.s32.totalorder %s10, 2
    // Predicated region
    $region17: #{_forward.10} parent=5 // pred_check
      %p128 = pneg %p127
    $region18: #{_forward.10} parent=5 // pred_check_branch
      %130 = sbr.rel (%p128) target = $region20
    $region19: #{_forward.10} parent=5 // pred_region
      // Predicated region
      $region21: #{_forward.10} parent=19 // pred_check
        %p131 = pneg %p30
      $region22: #{_forward.10} parent=19 // pred_check_branch
        %133 = sbr.rel (%p131) target = $region24
      $region23: #{_forward.10} parent=19 // pred_region
        %s134 = smul.u32 2, %s10
        %p135 = scmp.lt.s32.totalorder %s134, 3
        %s136 = scalar_select %p135, %s134, 3
        %s137 = smul.addr %s136, 3
        %s138 = smul.addr %s137, 4
        %s139 = scalar_lea.vmem %s0, %s138
        %s140 = smul.u32 2, %s10
      $region24: #{_forward.10} parent=19 // pred_fallthru
        _
    $region20: #{_forward.10} parent=5 // pred_fallthru
      _
    %p141 = scmp.le.s32.totalorder 1, %s10
    %p142 = scmp.lt.s32.totalorder %s10, 3
    %p143 = pnand %p141, %p142
    %p144 = pneg %p143
    // Predicated region
    $region25: #{_forward.10} parent=5 // pred_check
      _
    $region26: #{_forward.10} parent=5 // pred_check_branch
      %146 = sbr.rel (%p143) target = $region28
    $region27: #{_forward.10} parent=5 // pred_region
      %s147 = ssub.s32 %s10, 1
      %s148 = smul.u32 2, %s15
      %p149 = scmp.lt.s32.totalorder %s148, 3
      %s150 = scalar_select %p149, %s148, 3
      %s151 = smul.addr %s150, 3
      %s152 = smul.addr %s151, 4
      %s153 = scalar_lea.vmem %s0, %s152
      %p154 = pneg %p36
      %p155 = pneg %p33
      %p156 = pneg %p57
      %p157 = pneg %p54
      %p158 = pneg %p83
      %p159 = pneg %p80
      %s160 = smul.u32 2, %s15
      %p161 = scmp.lt.s32.totalorder %s160, 3
      %s162 = scalar_select %p161, %s160, 3
      %s163 = smul.addr %s162, 4
      %s164 = scalar_lea.vmem %s2, %s163
      %p165 = pneg %p109
      %p166 = pneg %p106
      %p167 = scmp.lt.s32.totalorder %s15, 1
      %s168 = scalar_select %p167, %s15, 1
      %s169 = smul.addr %s168, 8
      %s170 = scalar_lea.vmem %s3, %s169
      %s171 = smul.u32 2, %s15
      %p172 = scmp.lt.s32.totalorder %s171, 3
      %s173 = scalar_select %p172, %s171, 3
      %s174 = smul.addr %s173, 3
      %s175 = smul.addr %s174, 4
      %s176 = scalar_lea.vmem %s0, %s175
      %s177 = smul.u32 2, %s15
      %s178 = smul.u32 2, %s15
      %p179 = scmp.lt.s32.totalorder %s178, 3
      %s180 = scalar_select %p179, %s178, 3
      %s181 = smul.addr %s180, 4
      %s182 = scalar_lea.vmem %s2, %s181
      %s183 = smul.u32 2, %s15
      %p184 = scmp.lt.s32.totalorder %s15, 1
      %s185 = scalar_select %p184, %s15, 1
      %s186 = smul.addr %s185, 8
      %s187 = scalar_lea.vmem %s3, %s186
      %v189 = vld [vmem:[%s176] sm:$0xff]
      %v190 = vld [vmem:[%s176 + $0x8] sm:$0xf]
      %v191 = vld [vmem:[%s176 + $0xc] sm:$0xff]
      %v192 = vld [vmem:[%s176 + $0x14] sm:$0xf]
      %v193 = vld [vmem:[%s1] sm:$0xf]
      %v194 = vld [vmem:[%s1 + $0x4] sm:$0xf]
      %v195 = vld [vmem:[%s1 + $0x8] sm:$0xf]
      %v196 = vld [vmem:[%s1 + $0xc] sm:$0xf]
      %v197 = vld [vmem:[%s1 + $0x10] sm:$0xf]
      %v198 = vld [vmem:[%s1 + $0x14] sm:$0xf]
      %v199 = vld [vmem:[%s1 + $0x18] sm:$0xf]
      %v200 = vld [vmem:[%s1 + $0x1c] sm:$0xf]
      %v201 = vld [vmem:[%s1 + $0x20] sm:$0xf]
      %v202 = vld [vmem:[%s1 + $0x24] sm:$0xf]
      %v203 = vld [vmem:[%s1 + $0x28] sm:$0xf]
      %v204 = vld [vmem:[%s1 + $0x2c] sm:$0xf]
      %v205 = vld [vmem:[%s1 + $0x30] sm:$0xf]
      %v206 = vld [vmem:[%s1 + $0x34] sm:$0xf]
      %v207 = vld [vmem:[%s1 + $0x38] sm:$0xf]
      %v208 = vld [vmem:[%s1 + $0x3c] sm:$0xf]
      %v209 = vld [vmem:[%s1 + $0x40] sm:$0xf]
      %v210 = vld [vmem:[%s1 + $0x44] sm:$0xf]
      %v211 = vld [vmem:[%s1 + $0x48] sm:$0xf]
      %v212 = vld [vmem:[%s1 + $0x4c] sm:$0xf]
      %v213 = vld [vmem:[%s1 + $0x50] sm:$0xf]
      %v214 = vld [vmem:[%s1 + $0x54] sm:$0xf]
      %v215 = vld [vmem:[%s1 + $0x58] sm:$0xf]
      %v216 = vld [vmem:[%s1 + $0x5c] sm:$0xf]
      %v217 = vld [vmem:[%s1 + $0x60] sm:$0xf]
      %v218 = vld [vmem:[%s1 + $0x64] sm:$0xf]
      %v219 = vld [vmem:[%s1 + $0x68] sm:$0xf]
      %v220 = vld [vmem:[%s1 + $0x6c] sm:$0xf]
      %v221 = vld [vmem:[%s1 + $0x70] sm:$0xf]
      %v222 = vld [vmem:[%s1 + $0x74] sm:$0xf]
      %v223 = vld [vmem:[%s1 + $0x78] sm:$0xf]
      %v224 = vld [vmem:[%s1 + $0x7c] sm:$0xf]
      %v225 = vld [vmem:[%s1 + $0x80] sm:$0xf]
      %v226 = vld [vmem:[%s1 + $0x84] sm:$0xf]
      %v227 = vld [vmem:[%s1 + $0x88] sm:$0xf]
      %v228 = vld [vmem:[%s1 + $0x8c] sm:$0xf]
      %v233 = vunpack.c.l.b16 %v189
      %v234 = vunpack.c.h.b16 %v189
      %v235 = vunpack.c.l.b16 %v190
      %v236 = vunpack.c.l.b16 %v191
      %v237 = vunpack.c.h.b16 %v191
      %v238 = vunpack.c.l.b16 %v192
      %v239 = vpack.c.b16 %v236, %v233
      %v240 = vpack.c.b16 %v237, %v234
      %v241 = vpack.c.b16 %v238, %v235
      %v280 = vunpack.c.l.b16 %v193
      %v281 = vunpack.c.l.b16 %v194
      %v282 = vunpack.c.l.b16 %v195
      %v283 = vunpack.c.l.b16 %v196
      %v284 = vunpack.c.l.b16 %v197
      %v285 = vunpack.c.l.b16 %v198
      %v286 = vunpack.c.l.b16 %v199
      %v287 = vunpack.c.l.b16 %v200
      %v288 = vunpack.c.l.b16 %v201
      %v289 = vunpack.c.l.b16 %v202
      %v290 = vunpack.c.l.b16 %v203
      %v291 = vunpack.c.l.b16 %v204
      %v292 = vunpack.c.l.b16 %v205
      %v293 = vunpack.c.l.b16 %v206
      %v294 = vunpack.c.l.b16 %v207
      %v295 = vunpack.c.l.b16 %v208
      %v296 = vunpack.c.l.b16 %v209
      %v297 = vunpack.c.l.b16 %v210
      %v298 = vunpack.c.l.b16 %v211
      %v299 = vunpack.c.l.b16 %v212
      %v300 = vunpack.c.l.b16 %v213
      %v301 = vunpack.c.l.b16 %v214
      %v302 = vunpack.c.l.b16 %v215
      %v303 = vunpack.c.l.b16 %v216
      %v304 = vunpack.c.l.b16 %v217
      %v305 = vunpack.c.l.b16 %v218
      %v306 = vunpack.c.l.b16 %v219
      %v307 = vunpack.c.l.b16 %v220
      %v308 = vunpack.c.l.b16 %v221
      %v309 = vunpack.c.l.b16 %v222
      %v310 = vunpack.c.l.b16 %v223
      %v311 = vunpack.c.l.b16 %v224
      %v312 = vunpack.c.l.b16 %v225
      %v313 = vunpack.c.l.b16 %v226
      %v314 = vunpack.c.l.b16 %v227
      %v315 = vunpack.c.l.b16 %v228
      %v316 = vpack.c.b16 %v281, %v280
      %v317 = vpack.c.b16 %v283, %v282
      %v318 = vpack.c.b16 %v285, %v284
      %v319 = vpack.c.b16 %v287, %v286
      %v320 = vpack.c.b16 %v289, %v288
      %v321 = vpack.c.b16 %v291, %v290
      %v322 = vpack.c.b16 %v293, %v292
      %v323 = vpack.c.b16 %v295, %v294
      %v324 = vpack.c.b16 %v297, %v296
      %v325 = vpack.c.b16 %v299, %v298
      %v326 = vpack.c.b16 %v301, %v300
      %v327 = vpack.c.b16 %v303, %v302
      %v328 = vpack.c.b16 %v305, %v304
      %v329 = vpack.c.b16 %v307, %v306
      %v330 = vpack.c.b16 %v309, %v308
      %v331 = vpack.c.b16 %v311, %v310
      %v332 = vpack.c.b16 %v313, %v312
      %v333 = vpack.c.b16 %v315, %v314
      %vm352 = vcmask 261120
      %v354 = vsel %vm352, %v241, 0
      %356 = vmatprep.subr.bf16.mxu0 0
      %357 = vmatpush1.bf16.msra.mxu0 %v316
      %358 = vmatprep.subr.bf16.mxu0 0
      %359 = vmatpush1.bf16.msra.mxu0 %v317
      %360 = vmatprep.subr.bf16.mxu0 0
      %361 = vmatpush1.bf16.msra.mxu0 %v318
      %362 = vmatprep.subr.bf16.mxu0 0
      %363 = vmatpush1.bf16.msra.mxu0 %v319
      %364 = vmatprep.subr.bf16.mxu0 0
      %365 = vmatpush1.bf16.msra.mxu0 %v320
      %366 = vmatprep.subr.bf16.mxu0 0
      %367 = vmatpush1.bf16.msra.mxu0 %v321
      %368 = vmatprep.subr.bf16.mxu0 0
      %369 = vmatpush1.bf16.msra.mxu0 %v322
      %370 = vmatprep.subr.bf16.mxu0 0
      %371 = vmatpush1.bf16.msra.mxu0 %v323
      %372 = vmatprep.subr.bf16.mxu0 0
      %373 = vmatpush1.bf16.msra.mxu0 %v324
      %374 = vmatprep.subr.bf16.mxu0 0
      %375 = vmatpush1.bf16.msra.mxu0 %v325
      %376 = vmatprep.subr.bf16.mxu0 0
      %377 = vmatpush1.bf16.msra.mxu0 %v326
      %378 = vmatprep.subr.bf16.mxu0 0
      %379 = vmatpush1.bf16.msra.mxu0 %v327
      %380 = vmatprep.subr.bf16.mxu0 0
      %381 = vmatpush1.bf16.msra.mxu0 %v328
      %382 = vmatprep.subr.bf16.mxu0 0
      %383 = vmatpush1.bf16.msra.mxu0 %v329
      %384 = vmatprep.subr.bf16.mxu0 0
      %385 = vmatpush1.bf16.msra.mxu0 %v330
      %386 = vmatprep.subr.bf16.mxu0 0
      %387 = vmatpush1.bf16.msra.mxu0 %v331
      %388 = vmatprep.mubr.bf16.mxu0 %v240
      %389 = vmatmul.mubr.bf16.gmra.mrb[0].mxu0 %v239
      %v390 = vpop.f32.mrb[0].mxu0
      %v391 = vadd.f32 0.0, %v390
      %v392 = vpop.f32.mrb[0].mxu0
      %v393 = vpop.f32.mrb[0].mxu0
      %v394 = vadd.f32 0.0, %v393
      %v395 = vpop.f32.mrb[0].mxu0
      %396 = vdwg.mxu0
      %397 = vmatprep.subr.bf16.mxu0 0
      %398 = vmatpush1.bf16.msra.mxu0 %v332
      %399 = vmatprep.subr.bf16.mxu0 0
      %400 = vmatpush1.bf16.msra.mxu0 %v333
      %401 = vmatprep.subr.bf16.mxu0 0
      %402 = vmatpush1.bf16.msra.mxu0 0
      %403 = vmatprep.subr.bf16.mxu0 0
      %404 = vmatpush1.bf16.msra.mxu0 0
      %405 = vmatprep.subr.bf16.mxu0 0
      %406 = vmatpush1.bf16.msra.mxu0 0
      %407 = vmatprep.subr.bf16.mxu0 0
      %408 = vmatpush1.bf16.msra.mxu0 0
      %409 = vmatprep.subr.bf16.mxu0 0
      %410 = vmatpush1.bf16.msra.mxu0 0
      %411 = vmatprep.subr.bf16.mxu0 0
      %412 = vmatpush1.bf16.msra.mxu0 0
      %413 = vmatprep.subr.bf16.mxu0 0
      %414 = vmatpush1.bf16.msra.mxu0 0
      %415 = vmatprep.subr.bf16.mxu0 0
      %416 = vmatpush1.bf16.msra.mxu0 0
      %417 = vmatprep.subr.bf16.mxu0 0
      %418 = vmatpush1.bf16.msra.mxu0 0
      %419 = vmatprep.subr.bf16.mxu0 0
      %420 = vmatpush1.bf16.msra.mxu0 0
      %421 = vmatprep.subr.bf16.mxu0 0
      %422 = vmatpush1.bf16.msra.mxu0 0
      %423 = vmatprep.subr.bf16.mxu0 0
      %424 = vmatpush1.bf16.msra.mxu0 0
      %425 = vmatprep.subr.bf16.mxu0 0
      %426 = vmatpush1.bf16.msra.mxu0 0
      %427 = vmatprep.subr.bf16.mxu0 0
      %428 = vmatpush1.bf16.msra.mxu0 0
      %429 = vmatprep.mubr.bf16.mxu0 0
      %430 = vmatmul.mubr.bf16.gmra.mrb[0].mxu0 %v354
      %v431 = vpop.f32.mrb[0].mxu0
      %v432 = vadd.f32 %v391, %v431
      %v433 = vpop.f32.mrb[0].mxu0
      %v434 = vpop.f32.mrb[0].mxu0
      %v435 = vadd.f32 %v394, %v434
      %v436 = vpop.f32.mrb[0].mxu0
      %437 = vdwg.mxu0
      %vm438 = vcmask 523264
      %439 = vst.msk [vmem:[%s187] sm:$0xff] %vm438, 0.0
      %v440 = vsel %vm438, %v432, 0.0
      %v441 = vsel %vm438, %v435, 0.0
      %v442 = vadd.f32 %v440, %v441
      %v443 = vrot.slane %v442, 4
      %v444 = vadd.f32 %v442, %v443
      %v445 = vrot.slane %v444, 2
      %v446 = vadd.f32 %v444, %v445
      %v447 = vrot.slane %v446, 1
      %v448 = vadd.f32 %v446, %v447
      %vm449 = vcmask 516096
      %450 = vst.msk [vmem:[%s187] sm:$0x1] %vm449, %v448
      %v451 = vmul.f32 %v432, %v432
      %v452 = vmul.f32 %v435, %v435
      %v453 = vsel %vm438, %v451, 0.0
      %v454 = vsel %vm438, %v452, 0.0
      %v455 = vadd.f32 %v453, %v454
      %v456 = vrot.slane %v455, 4
      %v457 = vadd.f32 %v455, %v456
      %v458 = vrot.slane %v457, 2
      %v459 = vadd.f32 %v457, %v458
      %v460 = vrot.slane %v459, 1
      %v461 = vadd.f32 %v459, %v460
      %462 = vst.msk [vmem:[%s187 + $0x1] sm:$0x1] %vm449, %v461
      %v463 = vpack.c.bf16 %v435, %v432
      %v465 = vunpack.c.l.b16 %v463
      %v466 = vunpack.c.h.b16 %v463
      %v467 = vpack.c.b16 %v465, %v465
      %v468 = vpack.c.b16 %v466, %v466
      %vm471 = vcmask 519168
      %472 = vst.msk [vmem:[%s182] sm:$0xf] %vm471, %v467
      %473 = vst.msk [vmem:[%s182 + $0x4] sm:$0xf] %vm471, %v468
      %s474 = smul.u32 2, %s15
      %p475 = scmp.lt.s32.totalorder %s474, 3
      %s476 = scalar_select %p475, %s474, 3
      %s477 = smul.addr %s476, 4
      %s478 = scalar_lea.vmem %s2, %s477
      %p479 = scmp.lt.s32.totalorder %s15, 1
      %s480 = scalar_select %p479, %s15, 1
      %s481 = smul.addr %s480, 8
      %s482 = scalar_lea.vmem %s3, %s481
      // Predicated region
      $region29: #{_forward.10} parent=27 // pred_check
        %p483 = pneg %p80
      $region30: #{_forward.10} parent=27 // pred_check_branch
        %485 = sbr.rel (%p483) target = $region32
      $region31: #{_forward.10} parent=27 // pred_region
        %s486 = smul.u32 2, %s15
      $region32: #{_forward.10} parent=27 // pred_fallthru
        _
      // Predicated region
      $region33: #{_forward.10} parent=27 // pred_check
        %p487 = pneg %p106
      $region34: #{_forward.10} parent=27 // pred_check_branch
        %489 = sbr.rel (%p487) target = $region36
      $region35: #{_forward.10} parent=27 // pred_region
        _
      $region36: #{_forward.10} parent=27 // pred_fallthru
        _
    $region28: #{_forward.10} parent=5 // pred_fallthru
      _
    %p490 = scmp.le.s32.totalorder 2, %s10
    // Predicated region
    $region37: #{_forward.10} parent=5 // pred_check
      %p491 = pneg %p490
    $region38: #{_forward.10} parent=5 // pred_check_branch
      %493 = sbr.rel (%p491) target = $region40
    $region39: #{_forward.10} parent=5 // pred_region
      %s494 = ssub.s32 %s10, 2
      // Predicated region
      $region41: #{_forward.10} parent=39 // pred_check
        %p495 = pneg %p86
      $region42: #{_forward.10} parent=39 // pred_check_branch
        %497 = sbr.rel (%p495) target = $region44
      $region43: #{_forward.10} parent=39 // pred_region
        %s498 = smul.u32 2, %s16
        %p499 = scmp.lt.s32.totalorder %s498, 3
        %s500 = scalar_select %p499, %s498, 3
        %s501 = smul.addr %s500, 4
        %s502 = scalar_lea.vmem %s2, %s501
      $region44: #{_forward.10} parent=39 // pred_fallthru
        _
      // Predicated region
      $region45: #{_forward.10} parent=39 // pred_check
        %p503 = pneg %p112
      $region46: #{_forward.10} parent=39 // pred_check_branch
        %505 = sbr.rel (%p503) target = $region48
      $region47: #{_forward.10} parent=39 // pred_region
        %p506 = scmp.lt.s32.totalorder %s16, 1
        %s507 = scalar_select %p506, %s16, 1
        %s508 = smul.addr %s507, 8
        %s509 = scalar_lea.vmem %s3, %s508
      $region48: #{_forward.10} parent=39 // pred_fallthru
        _
    $region40: #{_forward.10} parent=5 // pred_fallthru
      _
  $region6: #{_forward.10} parent=0 // loop_footer
    %s14 = sadd.s32 1, %s10
  $region7: #{_forward.10} parent=0 // loop_footer_branch
    %9 = sbr.rel target = $region3
  $region8: #{_forward.10} parent=0 // loop_exit
    _

</llo_original>
